<compile_context>
chip_gen: v7x
topology: tpu7x:2x2x1
jax: 0.10.0
libtpu: 0.0.40
codegen_flags: <defaults>
</compile_context>

<pallas_src>
import functools

import jax
import jax.numpy as jnp
from jax import lax
from jax.experimental import pallas as pl
from jax.experimental.pallas import tpu as pltpu


def _gelu(x):
    # matches the reference: x * 0.5 * (1 + erf(x / 1.41421))
    return x * 0.5 * (1.0 + lax.erf(x / 1.41421))


def _layernorm(x, gamma, beta, eps):
    mu = jnp.mean(x, axis=-1, keepdims=True)
    var = jnp.mean((x - mu) ** 2, axis=-1, keepdims=True)
    return (x - mu) * lax.rsqrt(var + eps) * gamma + beta


def encoder_kernel(mask_ref, x_ref,
                   wq_ref, bq_ref, wk_ref, bk_ref, wv_ref, bv_ref,
                   wfc_ref, bfc_ref, w1_ref, b1_ref, w2_ref, b2_ref,
                   g1_ref, be1_ref, g2_ref, be2_ref,
                   out_ref, act_ref,
                   *, num_heads, eps, ln_pos, matmul_dtype):
    """One (batch b, layer l) grid step of the fused encoder.

    act_ref: (S, H) f32 VMEM scratch carrying the running activation for the
    current batch element across the inner ("arbitrary") layer axis.
    """
    l = pl.program_id(1)
    n_layers = pl.num_programs(1)

    @pl.when(l == 0)
    def _():
        act_ref[...] = x_ref[...].astype(jnp.float32)

    x = act_ref[...]                                   # (S, H) f32
    S, H = x.shape
    dh = H // num_heads
    scale = 1.0 / float(dh) ** 0.5

    mask = mask_ref[...].astype(jnp.float32)           # (1, S) additive mask

    # Hoist all small per-layer vectors once (no per-head re-broadcast).
    bq, bk, bv = bq_ref[...], bk_ref[...], bv_ref[...]
    bfc, b1, b2 = bfc_ref[...], b1_ref[...], b2_ref[...]
    g1, be1 = g1_ref[...], be1_ref[...]
    g2, be2 = g2_ref[...], be2_ref[...]

    def mm(a, w):                                      # a @ w, f32 accumulate
        return jnp.dot(a.astype(matmul_dtype), w.astype(matmul_dtype),
                       preferred_element_type=jnp.float32)

    def mm_t(a, b):                                    # a @ b.T, no transpose copy
        return lax.dot_general(a.astype(matmul_dtype), b.astype(matmul_dtype),
                               (((1,), (1,)), ((), ())),
                               preferred_element_type=jnp.float32)

    # ---- self-attention block (residual + LayerNorm) ----
    h_res = x
    src = x if ln_pos else _layernorm(x, g1, be1, eps)   # pre-LN if not ln_pos

    # fold 1/sqrt(dh) into q instead of scaling the (S, S) score tensor
    q = (mm(src, wq_ref[...]) + bq) * scale
    k = mm(src, wk_ref[...]) + bk
    v = mm(src, wv_ref[...]) + bv

    # Per-head attention via static slices; accumulate straight into the output
    # projection so no (S, nh, dh) reshape/transpose copy is materialized.
    # TODO(synk): flash-style KV tiling + lane-dense (>=128) blocks for production S/H.
    attn_out = jnp.broadcast_to(bfc, (S, H))
    for h in range(num_heads):
        sl = slice(h * dh, (h + 1) * dh)
        s_h = mm_t(q[:, sl], k[:, sl]) + mask            # (S, S)
        s_h = s_h - jnp.max(s_h, axis=-1, keepdims=True)
        p_h = jnp.exp(s_h)
        p_h = p_h * pl.reciprocal(jnp.sum(p_h, axis=-1, keepdims=True),
                                  approx=True)
        ctx_h = mm(p_h, v[:, sl])                        # (S, dh)
        attn_out = attn_out + mm(ctx_h, wfc_ref[sl, :])  # (S, H)

    src = h_res + attn_out
    if ln_pos:
        src = _layernorm(src, g1, be1, eps)              # post-LN if ln_pos

    # ---- position-wise FFN block (residual + LayerNorm) ----
    h_res = src
    ff_in = src if ln_pos else _layernorm(src, g2, be2, eps)
    hdn = _gelu(mm(ff_in, w1_ref[...]) + b1)
    src = h_res + mm(hdn, w2_ref[...]) + b2
    if ln_pos:
        src = _layernorm(src, g2, be2, eps)

    act_ref[...] = src

    @pl.when(l == n_layers - 1)
    def _():
        out_ref[...] = act_ref[...].astype(out_ref.dtype)


def encoder_forward(x, src_mask, stacked, *, num_heads, eps, ln_pos,
                    matmul_dtype=jnp.float32):
    """Fused Encoder forward: single pallas_call over grid=(B, L)."""
    B, S, H = x.shape
    names = ['wq', 'bq', 'wk', 'bk', 'wv', 'bv', 'wfc', 'bfc',
             'w1', 'b1', 'w2', 'b2', 'g1', 'be1', 'g2', 'be2']
    weights = [stacked[n] for n in names]
    L = weights[0].shape[0]

    # [B,1,1,S] additive mask -> [B,1,S]; kernel broadcasts over heads & query pos.
    mask = src_mask.reshape(B, 1, S)

    def wspec(arr):
        nd = arr.ndim
        return pl.BlockSpec((None,) + arr.shape[1:],
                            lambda b, l, _nd=nd: (l,) + (0,) * (_nd - 1))

    in_specs = (
        [pl.BlockSpec((None, 1, S), lambda b, l: (b, 0, 0)),   # mask -> (1, S)
         pl.BlockSpec((None, S, H), lambda b, l: (b, 0, 0))]   # x    -> (S, H)
        + [wspec(w) for w in weights]
    )

    kernel = functools.partial(encoder_kernel, num_heads=num_heads, eps=eps,
                               ln_pos=ln_pos, matmul_dtype=matmul_dtype)

    return pl.pallas_call(
        kernel,
        out_shape=jax.ShapeDtypeStruct((B, S, H), x.dtype),
        grid_spec=pltpu.PrefetchScalarGridSpec(
            num_scalar_prefetch=0,
            grid=(B, L),                                  # layer axis innermost
            in_specs=in_specs,
            out_specs=pl.BlockSpec((None, S, H), lambda b, l: (b, 0, 0)),
            scratch_shapes=[pltpu.VMEM((S, H), jnp.float32)],
        ),
        compiler_params=pltpu.CompilerParams(
            # batch shards across TensorCores (v7x megacore); layer axis is a
            # sequential carry on the VMEM activation scratch.
            dimension_semantics=("parallel", "arbitrary")),
    )(mask, x, *weights)


def init_stacked_params(key, num_layers, hidden, ff_dim, std=0.02):
    """Per-layer params stacked with a leading layer dim (weights as [in, out])."""
    f32 = jnp.float32

    def one_layer(k):
        ks = jax.random.split(k, 6)
        return {
            'wq': jax.random.normal(ks[0], (hidden, hidden), f32) * std,
            'bq': jnp.zeros((1, hidden), f32),
            'wk': jax.random.normal(ks[1], (hidden, hidden), f32) * std,
            'bk': jnp.zeros((1, hidden), f32),
            'wv': jax.random.normal(ks[2], (hidden, hidden), f32) * std,
            'bv': jnp.zeros((1, hidden), f32),
            'wfc': jax.random.normal(ks[3], (hidden, hidden), f32) * std,
            'bfc': jnp.zeros((1, hidden), f32),
            'w1': jax.random.normal(ks[4], (hidden, ff_dim), f32) * std,
            'b1': jnp.zeros((1, ff_dim), f32),
            'w2': jax.random.normal(ks[5], (ff_dim, hidden), f32) * std,
            'b2': jnp.zeros((1, hidden), f32),
            'g1': jnp.ones((1, hidden), f32),
            'be1': jnp.zeros((1, hidden), f32),
            'g2': jnp.ones((1, hidden), f32),
            'be2': jnp.zeros((1, hidden), f32),
        }

    layers = [one_layer(k) for k in jax.random.split(key, num_layers)]
    return {n: jnp.stack([lp[n] for lp in layers], axis=0) for n in layers[0]}


def encoder_reference(x, src_mask, stacked, *, num_heads, eps, ln_pos):
    """Pure-JAX reference mirroring the PyTorch module (for verification)."""
    B, S, H = x.shape
    dh = H // num_heads
    L = stacked['wq'].shape[0]

    def ln(v, g, b):
        mu = jnp.mean(v, -1, keepdims=True)
        var = jnp.mean((v - mu) ** 2, -1, keepdims=True)
        return (v - mu) / jnp.sqrt(var + eps) * g + b

    h = x
    for li in range(L):
        p = {n: stacked[n][li] for n in stacked}
        res = h
        src = h if ln_pos else ln(h, p['g1'], p['be1'])
        q = src @ p['wq'] + p['bq']
        k = src @ p['wk'] + p['bk']
        v = src @ p['wv'] + p['bv']
        q = q.reshape(B, S, num_heads, dh).transpose(0, 2, 1, 3)
        k = k.reshape(B, S, num_heads, dh).transpose(0, 2, 1, 3)
        v = v.reshape(B, S, num_heads, dh).transpose(0, 2, 1, 3)
        sc = jnp.einsum('bhqd,bhkd->bhqk', q, k) / jnp.sqrt(jnp.float32(dh))
        sc = sc + src_mask
        pr = jax.nn.softmax(sc, axis=-1)
        ctx = jnp.einsum('bhqk,bhkd->bhqd', pr, v)
        ctx = ctx.transpose(0, 2, 1, 3).reshape(B, S, H)
        src = res + (ctx @ p['wfc'] + p['bfc'])
        if ln_pos:
            src = ln(src, p['g1'], p['be1'])
        res = src
        ff_in = src if ln_pos else ln(src, p['g2'], p['be2'])
        hdn = ff_in @ p['w1'] + p['b1']
        hdn = hdn * 0.5 * (1.0 + lax.erf(hdn / 1.41421))
        src = res + (hdn @ p['w2'] + p['b2'])
        if ln_pos:
            src = ln(src, p['g2'], p['be2'])
        h = src
    return h


if __name__ == "__main__":
    # config: hidden_size=32, num_heads=4, ff_dim=64, num_hidden_layers=2,
    #         act_fn='gelu', LN_eps=1e-6, ln_pos=True (post-LN), dropout=0 (eval)
    B, S, H = 2, 8, 32
    NUM_HEADS, FF_DIM, NUM_LAYERS = 4, 64, 2
    LN_EPS, LN_POS = 1e-6, True

    key = jax.random.PRNGKey(0)
    k_x, k_params = jax.random.split(key)

    hidden_states = jax.random.normal(k_x, (B, S, H), jnp.float32)

    # additive attention mask [B, 1, 1, S]: last two keys of batch 1 masked out
    valid = jnp.ones((B, S), jnp.float32).at[1, -2:].set(0.0)
    src_mask = (1.0 - valid)[:, None, None, :] * (-1e9)

    params = init_stacked_params(k_params, NUM_LAYERS, H, FF_DIM)

    out = encoder_forward(hidden_states, src_mask, params,
                          num_heads=NUM_HEADS, eps=LN_EPS, ln_pos=LN_POS)
    out = jax.block_until_ready(out)
    assert out.shape == (B, S, H)

    ref = encoder_reference(hidden_states, src_mask, params,
                            num_heads=NUM_HEADS, eps=LN_EPS, ln_pos=LN_POS)
    err = float(jnp.max(jnp.abs(out - ref)))
    assert err < 5e-2, f"max abs err {err}"
    print("KERNEL_OK")
</pallas_src>

<mosaic_0001>
module attributes {stable_mosaic.version = 11 : i64} {
  func.func @encoder_kernel(%arg0: i32, %arg1: i32, %arg2: memref<1x1x8xf32, #tpu.memory_space<vmem>>, %arg3: memref<1x8x32xf32, #tpu.memory_space<vmem>>, %arg4: memref<1x32x32xf32, #tpu.memory_space<vmem>>, %arg5: memref<1x1x32xf32, #tpu.memory_space<vmem>>, %arg6: memref<1x32x32xf32, #tpu.memory_space<vmem>>, %arg7: memref<1x1x32xf32, #tpu.memory_space<vmem>>, %arg8: memref<1x32x32xf32, #tpu.memory_space<vmem>>, %arg9: memref<1x1x32xf32, #tpu.memory_space<vmem>>, %arg10: memref<1x32x32xf32, #tpu.memory_space<vmem>>, %arg11: memref<1x1x32xf32, #tpu.memory_space<vmem>>, %arg12: memref<1x32x64xf32, #tpu.memory_space<vmem>>, %arg13: memref<1x1x64xf32, #tpu.memory_space<vmem>>, %arg14: memref<1x64x32xf32, #tpu.memory_space<vmem>>, %arg15: memref<1x1x32xf32, #tpu.memory_space<vmem>>, %arg16: memref<1x1x32xf32, #tpu.memory_space<vmem>>, %arg17: memref<1x1x32xf32, #tpu.memory_space<vmem>>, %arg18: memref<1x1x32xf32, #tpu.memory_space<vmem>>, %arg19: memref<1x1x32xf32, #tpu.memory_space<vmem>>, %arg20: memref<1x8x32xf32, #tpu.memory_space<vmem>>, %arg21: memref<8x32xf32, #tpu.memory_space<vmem>>) attributes {dimension_semantics = [#tpu.dimension_semantics<parallel>, #tpu.dimension_semantics<arbitrary>], iteration_bounds = array<i64: 2, 2>, scalar_prefetch = 0 : i64, scratch_operands = 1 : i64, tpu.core_type = #tpu.core_type<tc>, window_params = [{transform_indices = @transform_0, window_bounds = array<i64: 1, 1, 8>}, {transform_indices = @transform_1, window_bounds = array<i64: 1, 8, 32>}, {transform_indices = @transform_2, window_bounds = array<i64: 1, 32, 32>}, {transform_indices = @transform_3, window_bounds = array<i64: 1, 1, 32>}, {transform_indices = @transform_4, window_bounds = array<i64: 1, 32, 32>}, {transform_indices = @transform_5, window_bounds = array<i64: 1, 1, 32>}, {transform_indices = @transform_6, window_bounds = array<i64: 1, 32, 32>}, {transform_indices = @transform_7, window_bounds = array<i64: 1, 1, 32>}, {transform_indices = @transform_8, window_bounds = array<i64: 1, 32, 32>}, {transform_indices = @transform_9, window_bounds = array<i64: 1, 1, 32>}, {transform_indices = @transform_10, window_bounds = array<i64: 1, 32, 64>}, {transform_indices = @transform_11, window_bounds = array<i64: 1, 1, 64>}, {transform_indices = @transform_12, window_bounds = array<i64: 1, 64, 32>}, {transform_indices = @transform_13, window_bounds = array<i64: 1, 1, 32>}, {transform_indices = @transform_14, window_bounds = array<i64: 1, 1, 32>}, {transform_indices = @transform_15, window_bounds = array<i64: 1, 1, 32>}, {transform_indices = @transform_16, window_bounds = array<i64: 1, 1, 32>}, {transform_indices = @transform_17, window_bounds = array<i64: 1, 1, 32>}, {transform_indices = @transform_18, window_bounds = array<i64: 1, 8, 32>}]} {
    %c0_i32 = arith.constant 0 : i32
    %0 = arith.cmpi eq, %arg1, %c0_i32 : i32
    %1 = arith.extui %0 : i1 to i32
    %c0_i32_0 = arith.constant 0 : i32
    %2 = arith.cmpi ne, %1, %c0_i32_0 : i32
    scf.if %2 {
      %c0_100 = arith.constant 0 : index
      %c0_101 = arith.constant 0 : index
      %c0_102 = arith.constant 0 : index
      %197 = vector.load %arg3[%c0_100, %c0_101, %c0_102] : memref<1x8x32xf32, #tpu.memory_space<vmem>>, vector<1x8x32xf32>
      %198 = vector.shape_cast %197 : vector<1x8x32xf32> to vector<8x32xf32>
      %c0_103 = arith.constant 0 : index
      %c0_104 = arith.constant 0 : index
      %199 = vector.load %arg21[%c0_103, %c0_104] : memref<8x32xf32, #tpu.memory_space<vmem>>, vector<8x32xf32>
      tpu.vector_store %arg21[%c0_103, %c0_104], %198 {strides = array<i32>} : memref<8x32xf32, #tpu.memory_space<vmem>>, vector<8x32xf32>,
    } else {
    }
    %c0 = arith.constant 0 : index
    %c0_1 = arith.constant 0 : index
    %3 = vector.load %arg21[%c0, %c0_1] : memref<8x32xf32, #tpu.memory_space<vmem>>, vector<8x32xf32>
    %c0_2 = arith.constant 0 : index
    %c0_3 = arith.constant 0 : index
    %c0_4 = arith.constant 0 : index
    %4 = vector.load %arg2[%c0_2, %c0_3, %c0_4] : memref<1x1x8xf32, #tpu.memory_space<vmem>>, vector<1x1x8xf32>
    %5 = vector.shape_cast %4 : vector<1x1x8xf32> to vector<1x8xf32>
    %c0_5 = arith.constant 0 : index
    %c0_6 = arith.constant 0 : index
    %c0_7 = arith.constant 0 : index
    %6 = vector.load %arg5[%c0_5, %c0_6, %c0_7] : memref<1x1x32xf32, #tpu.memory_space<vmem>>, vector<1x1x32xf32>
    %7 = vector.shape_cast %6 : vector<1x1x32xf32> to vector<1x32xf32>
    %c0_8 = arith.constant 0 : index
    %c0_9 = arith.constant 0 : index
    %c0_10 = arith.constant 0 : index
    %8 = vector.load %arg7[%c0_8, %c0_9, %c0_10] : memref<1x1x32xf32, #tpu.memory_space<vmem>>, vector<1x1x32xf32>
    %9 = vector.shape_cast %8 : vector<1x1x32xf32> to vector<1x32xf32>
    %c0_11 = arith.constant 0 : index
    %c0_12 = arith.constant 0 : index
    %c0_13 = arith.constant 0 : index
    %10 = vector.load %arg9[%c0_11, %c0_12, %c0_13] : memref<1x1x32xf32, #tpu.memory_space<vmem>>, vector<1x1x32xf32>
    %11 = vector.shape_cast %10 : vector<1x1x32xf32> to vector<1x32xf32>
    %c0_14 = arith.constant 0 : index
    %c0_15 = arith.constant 0 : index
    %c0_16 = arith.constant 0 : index
    %12 = vector.load %arg11[%c0_14, %c0_15, %c0_16] : memref<1x1x32xf32, #tpu.memory_space<vmem>>, vector<1x1x32xf32>
    %13 = vector.shape_cast %12 : vector<1x1x32xf32> to vector<1x32xf32>
    %c0_17 = arith.constant 0 : index
    %c0_18 = arith.constant 0 : index
    %c0_19 = arith.constant 0 : index
    %14 = vector.load %arg13[%c0_17, %c0_18, %c0_19] : memref<1x1x64xf32, #tpu.memory_space<vmem>>, vector<1x1x64xf32>
    %15 = vector.shape_cast %14 : vector<1x1x64xf32> to vector<1x64xf32>
    %c0_20 = arith.constant 0 : index
    %c0_21 = arith.constant 0 : index
    %c0_22 = arith.constant 0 : index
    %16 = vector.load %arg15[%c0_20, %c0_21, %c0_22] : memref<1x1x32xf32, #tpu.memory_space<vmem>>, vector<1x1x32xf32>
    %17 = vector.shape_cast %16 : vector<1x1x32xf32> to vector<1x32xf32>
    %c0_23 = arith.constant 0 : index
    %c0_24 = arith.constant 0 : index
    %c0_25 = arith.constant 0 : index
    %18 = vector.load %arg16[%c0_23, %c0_24, %c0_25] : memref<1x1x32xf32, #tpu.memory_space<vmem>>, vector<1x1x32xf32>
    %19 = vector.shape_cast %18 : vector<1x1x32xf32> to vector<1x32xf32>
    %c0_26 = arith.constant 0 : index
    %c0_27 = arith.constant 0 : index
    %c0_28 = arith.constant 0 : index
    %20 = vector.load %arg17[%c0_26, %c0_27, %c0_28] : memref<1x1x32xf32, #tpu.memory_space<vmem>>, vector<1x1x32xf32>
    %21 = vector.shape_cast %20 : vector<1x1x32xf32> to vector<1x32xf32>
    %c0_29 = arith.constant 0 : index
    %c0_30 = arith.constant 0 : index
    %c0_31 = arith.constant 0 : index
    %22 = vector.load %arg18[%c0_29, %c0_30, %c0_31] : memref<1x1x32xf32, #tpu.memory_space<vmem>>, vector<1x1x32xf32>
    %23 = vector.shape_cast %22 : vector<1x1x32xf32> to vector<1x32xf32>
    %c0_32 = arith.constant 0 : index
    %c0_33 = arith.constant 0 : index
    %c0_34 = arith.constant 0 : index
    %24 = vector.load %arg19[%c0_32, %c0_33, %c0_34] : memref<1x1x32xf32, #tpu.memory_space<vmem>>, vector<1x1x32xf32>
    %25 = vector.shape_cast %24 : vector<1x1x32xf32> to vector<1x32xf32>
    %c0_35 = arith.constant 0 : index
    %c0_36 = arith.constant 0 : index
    %c0_37 = arith.constant 0 : index
    %26 = vector.load %arg4[%c0_35, %c0_36, %c0_37] : memref<1x32x32xf32, #tpu.memory_space<vmem>>, vector<1x32x32xf32>
    %27 = vector.shape_cast %26 : vector<1x32x32xf32> to vector<32x32xf32>
    %cst = arith.constant dense<0.000000e+00> : vector<8x32xf32>
    %28 = tpu.matmul %3, %27, %cst {dimension_numbers = #tpu.dot_dimension_numbers<[1], [0], [0], [1], [0, 0, 1, 1], [], []>} : vector<8x32xf32>, vector<32x32xf32>, vector<8x32xf32> -> vector<8x32xf32>
    %29 = vector.broadcast %7 : vector<1x32xf32> to vector<8x32xf32>
    %30 = arith.addf %28, %29 : vector<8x32xf32>
    %cst_38 = arith.constant 0.353553385 : f32
    %31 = vector.broadcast %cst_38 : f32 to vector<8x32xf32>
    %32 = arith.mulf %30, %31 : vector<8x32xf32>
    %c0_39 = arith.constant 0 : index
    %c0_40 = arith.constant 0 : index
    %c0_41 = arith.constant 0 : index
    %33 = vector.load %arg6[%c0_39, %c0_40, %c0_41] : memref<1x32x32xf32, #tpu.memory_space<vmem>>, vector<1x32x32xf32>
    %34 = vector.shape_cast %33 : vector<1x32x32xf32> to vector<32x32xf32>
    %cst_42 = arith.constant dense<0.000000e+00> : vector<8x32xf32>
    %35 = tpu.matmul %3, %34, %cst_42 {dimension_numbers = #tpu.dot_dimension_numbers<[1], [0], [0], [1], [0, 0, 1, 1], [], []>} : vector<8x32xf32>, vector<32x32xf32>, vector<8x32xf32> -> vector<8x32xf32>
    %36 = vector.broadcast %9 : vector<1x32xf32> to vector<8x32xf32>
    %37 = arith.addf %35, %36 : vector<8x32xf32>
    %c0_43 = arith.constant 0 : index
    %c0_44 = arith.constant 0 : index
    %c0_45 = arith.constant 0 : index
    %38 = vector.load %arg8[%c0_43, %c0_44, %c0_45] : memref<1x32x32xf32, #tpu.memory_space<vmem>>, vector<1x32x32xf32>
    %39 = vector.shape_cast %38 : vector<1x32x32xf32> to vector<32x32xf32>
    %cst_46 = arith.constant dense<0.000000e+00> : vector<8x32xf32>
    %40 = tpu.matmul %3, %39, %cst_46 {dimension_numbers = #tpu.dot_dimension_numbers<[1], [0], [0], [1], [0, 0, 1, 1], [], []>} : vector<8x32xf32>, vector<32x32xf32>, vector<8x32xf32> -> vector<8x32xf32>
    %41 = vector.broadcast %11 : vector<1x32xf32> to vector<8x32xf32>
    %42 = arith.addf %40, %41 : vector<8x32xf32>
    %43 = vector.shape_cast %13 : vector<1x32xf32> to vector<1x32xf32>
    %44 = vector.broadcast %43 : vector<1x32xf32> to vector<8x32xf32>
    %45 = vector.extract_strided_slice %32 {offsets = [0, 0], sizes = [8, 8], strides = [1, 1]} : vector<8x32xf32> to vector<8x8xf32>
    %46 = vector.extract_strided_slice %37 {offsets = [0, 0], sizes = [8, 8], strides = [1, 1]} : vector<8x32xf32> to vector<8x8xf32>
    %cst_47 = arith.constant dense<0.000000e+00> : vector<8x8xf32>
    %47 = tpu.matmul %45, %46, %cst_47 {dimension_numbers = #tpu.dot_dimension_numbers<[1], [1], [0], [0], [0, 0, 1, 0], [], []>} : vector<8x8xf32>, vector<8x8xf32>, vector<8x8xf32> -> vector<8x8xf32>
    %48 = vector.broadcast %5 : vector<1x8xf32> to vector<8x8xf32>
    %49 = arith.addf %47, %48 : vector<8x8xf32>
    %cst_48 = arith.constant dense<0xFF800000> : vector<8xf32>
    %50 = vector.multi_reduction <maximumf>, %49, %cst_48 [1] : vector<8x8xf32> to vector<8xf32>
    %51 = vector.shape_cast %50 : vector<8xf32> to vector<8x1xf32>
    %52 = vector.broadcast %51 : vector<8x1xf32> to vector<8x8xf32>
    %53 = arith.subf %49, %52 : vector<8x8xf32>
    %54 = math.exp %53 : vector<8x8xf32>
    %cst_49 = arith.constant dense<0.000000e+00> : vector<8xf32>
    %55 = vector.multi_reduction <add>, %54, %cst_49 [1] : vector<8x8xf32> to vector<8xf32>
    %56 = vector.shape_cast %55 : vector<8xf32> to vector<8x1xf32>
    %57 = tpu.reciprocal %56 {approx = true} : vector<8x1xf32> -> vector<8x1xf32>
    %58 = vector.broadcast %57 : vector<8x1xf32> to vector<8x8xf32>
    %59 = arith.mulf %54, %58 : vector<8x8xf32>
    %60 = vector.extract_strided_slice %42 {offsets = [0, 0], sizes = [8, 8], strides = [1, 1]} : vector<8x32xf32> to vector<8x8xf32>
    %cst_50 = arith.constant dense<0.000000e+00> : vector<8x8xf32>
    %61 = tpu.matmul %59, %60, %cst_50 {dimension_numbers = #tpu.dot_dimension_numbers<[1], [0], [0], [1], [0, 0, 1, 1], [], []>} : vector<8x8xf32>, vector<8x8xf32>, vector<8x8xf32> -> vector<8x8xf32>
    %c0_51 = arith.constant 0 : index
    %c0_52 = arith.constant 0 : index
    %c0_53 = arith.constant 0 : index
    %62 = vector.load %arg10[%c0_51, %c0_52, %c0_53] : memref<1x32x32xf32, #tpu.memory_space<vmem>>, vector<1x8x32xf32>
    %63 = vector.shape_cast %62 : vector<1x8x32xf32> to vector<8x32xf32>
    %cst_54 = arith.constant dense<0.000000e+00> : vector<8x32xf32>
    %64 = tpu.matmul %61, %63, %cst_54 {dimension_numbers = #tpu.dot_dimension_numbers<[1], [0], [0], [1], [0, 0, 1, 1], [], []>} : vector<8x8xf32>, vector<8x32xf32>, vector<8x32xf32> -> vector<8x32xf32>
    %65 = arith.addf %44, %64 : vector<8x32xf32>
    %66 = vector.extract_strided_slice %32 {offsets = [0, 8], sizes = [8, 8], strides = [1, 1]} : vector<8x32xf32> to vector<8x8xf32>
    %67 = vector.extract_strided_slice %37 {offsets = [0, 8], sizes = [8, 8], strides = [1, 1]} : vector<8x32xf32> to vector<8x8xf32>
    %cst_55 = arith.constant dense<0.000000e+00> : vector<8x8xf32>
    %68 = tpu.matmul %66, %67, %cst_55 {dimension_numbers = #tpu.dot_dimension_numbers<[1], [1], [0], [0], [0, 0, 1, 0], [], []>} : vector<8x8xf32>, vector<8x8xf32>, vector<8x8xf32> -> vector<8x8xf32>
    %69 = vector.broadcast %5 : vector<1x8xf32> to vector<8x8xf32>
    %70 = arith.addf %68, %69 : vector<8x8xf32>
    %cst_56 = arith.constant dense<0xFF800000> : vector<8xf32>
    %71 = vector.multi_reduction <maximumf>, %70, %cst_56 [1] : vector<8x8xf32> to vector<8xf32>
    %72 = vector.shape_cast %71 : vector<8xf32> to vector<8x1xf32>
    %73 = vector.broadcast %72 : vector<8x1xf32> to vector<8x8xf32>
    %74 = arith.subf %70, %73 : vector<8x8xf32>
    %75 = math.exp %74 : vector<8x8xf32>
    %cst_57 = arith.constant dense<0.000000e+00> : vector<8xf32>
    %76 = vector.multi_reduction <add>, %75, %cst_57 [1] : vector<8x8xf32> to vector<8xf32>
    %77 = vector.shape_cast %76 : vector<8xf32> to vector<8x1xf32>
    %78 = tpu.reciprocal %77 {approx = true} : vector<8x1xf32> -> vector<8x1xf32>
    %79 = vector.broadcast %78 : vector<8x1xf32> to vector<8x8xf32>
    %80 = arith.mulf %75, %79 : vector<8x8xf32>
    %81 = vector.extract_strided_slice %42 {offsets = [0, 8], sizes = [8, 8], strides = [1, 1]} : vector<8x32xf32> to vector<8x8xf32>
    %cst_58 = arith.constant dense<0.000000e+00> : vector<8x8xf32>
    %82 = tpu.matmul %80, %81, %cst_58 {dimension_numbers = #tpu.dot_dimension_numbers<[1], [0], [0], [1], [0, 0, 1, 1], [], []>} : vector<8x8xf32>, vector<8x8xf32>, vector<8x8xf32> -> vector<8x8xf32>
    %c0_59 = arith.constant 0 : index
    %c8 = arith.constant 8 : index
    %c0_60 = arith.constant 0 : index
    %83 = vector.load %arg10[%c0_59, %c8, %c0_60] : memref<1x32x32xf32, #tpu.memory_space<vmem>>, vector<1x8x32xf32>
    %84 = vector.shape_cast %83 : vector<1x8x32xf32> to vector<8x32xf32>
    %cst_61 = arith.constant dense<0.000000e+00> : vector<8x32xf32>
    %85 = tpu.matmul %82, %84, %cst_61 {dimension_numbers = #tpu.dot_dimension_numbers<[1], [0], [0], [1], [0, 0, 1, 1], [], []>} : vector<8x8xf32>, vector<8x32xf32>, vector<8x32xf32> -> vector<8x32xf32>
    %86 = arith.addf %65, %85 : vector<8x32xf32>
    %87 = vector.extract_strided_slice %32 {offsets = [0, 16], sizes = [8, 8], strides = [1, 1]} : vector<8x32xf32> to vector<8x8xf32>
    %88 = vector.extract_strided_slice %37 {offsets = [0, 16], sizes = [8, 8], strides = [1, 1]} : vector<8x32xf32> to vector<8x8xf32>
    %cst_62 = arith.constant dense<0.000000e+00> : vector<8x8xf32>
    %89 = tpu.matmul %87, %88, %cst_62 {dimension_numbers = #tpu.dot_dimension_numbers<[1], [1], [0], [0], [0, 0, 1, 0], [], []>} : vector<8x8xf32>, vector<8x8xf32>, vector<8x8xf32> -> vector<8x8xf32>
    %90 = vector.broadcast %5 : vector<1x8xf32> to vector<8x8xf32>
    %91 = arith.addf %89, %90 : vector<8x8xf32>
    %cst_63 = arith.constant dense<0xFF800000> : vector<8xf32>
    %92 = vector.multi_reduction <maximumf>, %91, %cst_63 [1] : vector<8x8xf32> to vector<8xf32>
    %93 = vector.shape_cast %92 : vector<8xf32> to vector<8x1xf32>
    %94 = vector.broadcast %93 : vector<8x1xf32> to vector<8x8xf32>
    %95 = arith.subf %91, %94 : vector<8x8xf32>
    %96 = math.exp %95 : vector<8x8xf32>
    %cst_64 = arith.constant dense<0.000000e+00> : vector<8xf32>
    %97 = vector.multi_reduction <add>, %96, %cst_64 [1] : vector<8x8xf32> to vector<8xf32>
    %98 = vector.shape_cast %97 : vector<8xf32> to vector<8x1xf32>
    %99 = tpu.reciprocal %98 {approx = true} : vector<8x1xf32> -> vector<8x1xf32>
    %100 = vector.broadcast %99 : vector<8x1xf32> to vector<8x8xf32>
    %101 = arith.mulf %96, %100 : vector<8x8xf32>
    %102 = vector.extract_strided_slice %42 {offsets = [0, 16], sizes = [8, 8], strides = [1, 1]} : vector<8x32xf32> to vector<8x8xf32>
    %cst_65 = arith.constant dense<0.000000e+00> : vector<8x8xf32>
    %103 = tpu.matmul %101, %102, %cst_65 {dimension_numbers = #tpu.dot_dimension_numbers<[1], [0], [0], [1], [0, 0, 1, 1], [], []>} : vector<8x8xf32>, vector<8x8xf32>, vector<8x8xf32> -> vector<8x8xf32>
    %c0_66 = arith.constant 0 : index
    %c16 = arith.constant 16 : index
    %c0_67 = arith.constant 0 : index
    %104 = vector.load %arg10[%c0_66, %c16, %c0_67] : memref<1x32x32xf32, #tpu.memory_space<vmem>>, vector<1x8x32xf32>
    %105 = vector.shape_cast %104 : vector<1x8x32xf32> to vector<8x32xf32>
    %cst_68 = arith.constant dense<0.000000e+00> : vector<8x32xf32>
    %106 = tpu.matmul %103, %105, %cst_68 {dimension_numbers = #tpu.dot_dimension_numbers<[1], [0], [0], [1], [0, 0, 1, 1], [], []>} : vector<8x8xf32>, vector<8x32xf32>, vector<8x32xf32> -> vector<8x32xf32>
    %107 = arith.addf %86, %106 : vector<8x32xf32>
    %108 = vector.extract_strided_slice %32 {offsets = [0, 24], sizes = [8, 8], strides = [1, 1]} : vector<8x32xf32> to vector<8x8xf32>
    %109 = vector.extract_strided_slice %37 {offsets = [0, 24], sizes = [8, 8], strides = [1, 1]} : vector<8x32xf32> to vector<8x8xf32>
    %cst_69 = arith.constant dense<0.000000e+00> : vector<8x8xf32>
    %110 = tpu.matmul %108, %109, %cst_69 {dimension_numbers = #tpu.dot_dimension_numbers<[1], [1], [0], [0], [0, 0, 1, 0], [], []>} : vector<8x8xf32>, vector<8x8xf32>, vector<8x8xf32> -> vector<8x8xf32>
    %111 = vector.broadcast %5 : vector<1x8xf32> to vector<8x8xf32>
    %112 = arith.addf %110, %111 : vector<8x8xf32>
    %cst_70 = arith.constant dense<0xFF800000> : vector<8xf32>
    %113 = vector.multi_reduction <maximumf>, %112, %cst_70 [1] : vector<8x8xf32> to vector<8xf32>
    %114 = vector.shape_cast %113 : vector<8xf32> to vector<8x1xf32>
    %115 = vector.broadcast %114 : vector<8x1xf32> to vector<8x8xf32>
    %116 = arith.subf %112, %115 : vector<8x8xf32>
    %117 = math.exp %116 : vector<8x8xf32>
    %cst_71 = arith.constant dense<0.000000e+00> : vector<8xf32>
    %118 = vector.multi_reduction <add>, %117, %cst_71 [1] : vector<8x8xf32> to vector<8xf32>
    %119 = vector.shape_cast %118 : vector<8xf32> to vector<8x1xf32>
    %120 = tpu.reciprocal %119 {approx = true} : vector<8x1xf32> -> vector<8x1xf32>
    %121 = vector.broadcast %120 : vector<8x1xf32> to vector<8x8xf32>
    %122 = arith.mulf %117, %121 : vector<8x8xf32>
    %123 = vector.extract_strided_slice %42 {offsets = [0, 24], sizes = [8, 8], strides = [1, 1]} : vector<8x32xf32> to vector<8x8xf32>
    %cst_72 = arith.constant dense<0.000000e+00> : vector<8x8xf32>
    %124 = tpu.matmul %122, %123, %cst_72 {dimension_numbers = #tpu.dot_dimension_numbers<[1], [0], [0], [1], [0, 0, 1, 1], [], []>} : vector<8x8xf32>, vector<8x8xf32>, vector<8x8xf32> -> vector<8x8xf32>
    %c0_73 = arith.constant 0 : index
    %c24 = arith.constant 24 : index
    %c0_74 = arith.constant 0 : index
    %125 = vector.load %arg10[%c0_73, %c24, %c0_74] : memref<1x32x32xf32, #tpu.memory_space<vmem>>, vector<1x8x32xf32>
    %126 = vector.shape_cast %125 : vector<1x8x32xf32> to vector<8x32xf32>
    %cst_75 = arith.constant dense<0.000000e+00> : vector<8x32xf32>
    %127 = tpu.matmul %124, %126, %cst_75 {dimension_numbers = #tpu.dot_dimension_numbers<[1], [0], [0], [1], [0, 0, 1, 1], [], []>} : vector<8x8xf32>, vector<8x32xf32>, vector<8x32xf32> -> vector<8x32xf32>
    %128 = arith.addf %107, %127 : vector<8x32xf32>
    %129 = arith.addf %3, %128 : vector<8x32xf32>
    %cst_76 = arith.constant dense<0.000000e+00> : vector<8xf32>
    %130 = vector.multi_reduction <add>, %129, %cst_76 [1] : vector<8x32xf32> to vector<8xf32>
    %131 = vector.shape_cast %130 : vector<8xf32> to vector<8x1xf32>
    %cst_77 = arith.constant 3.200000e+01 : f32
    %132 = vector.broadcast %cst_77 : f32 to vector<8x1xf32>
    %133 = arith.divf %131, %132 : vector<8x1xf32>
    %134 = vector.broadcast %133 : vector<8x1xf32> to vector<8x32xf32>
    %135 = arith.subf %129, %134 : vector<8x32xf32>
    %136 = arith.mulf %135, %135 : vector<8x32xf32>
    %cst_78 = arith.constant dense<0.000000e+00> : vector<8xf32>
    %137 = vector.multi_reduction <add>, %136, %cst_78 [1] : vector<8x32xf32> to vector<8xf32>
    %138 = vector.shape_cast %137 : vector<8xf32> to vector<8x1xf32>
    %cst_79 = arith.constant 3.200000e+01 : f32
    %139 = vector.broadcast %cst_79 : f32 to vector<8x1xf32>
    %140 = arith.divf %138, %139 : vector<8x1xf32>
    %141 = vector.broadcast %133 : vector<8x1xf32> to vector<8x32xf32>
    %142 = arith.subf %129, %141 : vector<8x32xf32>
    %cst_80 = arith.constant 9.99999997E-7 : f32
    %143 = vector.broadcast %cst_80 : f32 to vector<8x1xf32>
    %144 = arith.addf %140, %143 : vector<8x1xf32>
    %145 = math.rsqrt %144 : vector<8x1xf32>
    %146 = vector.broadcast %145 : vector<8x1xf32> to vector<8x32xf32>
    %147 = arith.mulf %142, %146 : vector<8x32xf32>
    %148 = vector.broadcast %19 : vector<1x32xf32> to vector<8x32xf32>
    %149 = arith.mulf %147, %148 : vector<8x32xf32>
    %150 = vector.broadcast %21 : vector<1x32xf32> to vector<8x32xf32>
    %151 = arith.addf %149, %150 : vector<8x32xf32>
    %c0_81 = arith.constant 0 : index
    %c0_82 = arith.constant 0 : index
    %c0_83 = arith.constant 0 : index
    %152 = vector.load %arg12[%c0_81, %c0_82, %c0_83] : memref<1x32x64xf32, #tpu.memory_space<vmem>>, vector<1x32x64xf32>
    %153 = vector.shape_cast %152 : vector<1x32x64xf32> to vector<32x64xf32>
    %cst_84 = arith.constant dense<0.000000e+00> : vector<8x64xf32>
    %154 = tpu.matmul %151, %153, %cst_84 {dimension_numbers = #tpu.dot_dimension_numbers<[1], [0], [0], [1], [0, 0, 1, 1], [], []>} : vector<8x32xf32>, vector<32x64xf32>, vector<8x64xf32> -> vector<8x64xf32>
    %155 = vector.broadcast %15 : vector<1x64xf32> to vector<8x64xf32>
    %156 = arith.addf %154, %155 : vector<8x64xf32>
    %cst_85 = arith.constant 5.000000e-01 : f32
    %157 = vector.broadcast %cst_85 : f32 to vector<8x64xf32>
    %158 = arith.mulf %156, %157 : vector<8x64xf32>
    %cst_86 = arith.constant 1.414210e+00 : f32
    %159 = vector.broadcast %cst_86 : f32 to vector<8x64xf32>
    %160 = arith.divf %156, %159 : vector<8x64xf32>
    %161 = math.erf %160 : vector<8x64xf32>
    %cst_87 = arith.constant 1.000000e+00 : f32
    %162 = vector.broadcast %cst_87 : f32 to vector<8x64xf32>
    %163 = arith.addf %162, %161 : vector<8x64xf32>
    %164 = arith.mulf %158, %163 : vector<8x64xf32>
    %c0_88 = arith.constant 0 : index
    %c0_89 = arith.constant 0 : index
    %c0_90 = arith.constant 0 : index
    %165 = vector.load %arg14[%c0_88, %c0_89, %c0_90] : memref<1x64x32xf32, #tpu.memory_space<vmem>>, vector<1x64x32xf32>
    %166 = vector.shape_cast %165 : vector<1x64x32xf32> to vector<64x32xf32>
    %cst_91 = arith.constant dense<0.000000e+00> : vector<8x32xf32>
    %167 = tpu.matmul %164, %166, %cst_91 {dimension_numbers = #tpu.dot_dimension_numbers<[1], [0], [0], [1], [0, 0, 1, 1], [], []>} : vector<8x64xf32>, vector<64x32xf32>, vector<8x32xf32> -> vector<8x32xf32>
    %168 = arith.addf %151, %167 : vector<8x32xf32>
    %169 = vector.broadcast %17 : vector<1x32xf32> to vector<8x32xf32>
    %170 = arith.addf %168, %169 : vector<8x32xf32>
    %cst_92 = arith.constant dense<0.000000e+00> : vector<8xf32>
    %171 = vector.multi_reduction <add>, %170, %cst_92 [1] : vector<8x32xf32> to vector<8xf32>
    %172 = vector.shape_cast %171 : vector<8xf32> to vector<8x1xf32>
    %cst_93 = arith.constant 3.200000e+01 : f32
    %173 = vector.broadcast %cst_93 : f32 to vector<8x1xf32>
    %174 = arith.divf %172, %173 : vector<8x1xf32>
    %175 = vector.broadcast %174 : vector<8x1xf32> to vector<8x32xf32>
    %176 = arith.subf %170, %175 : vector<8x32xf32>
    %177 = arith.mulf %176, %176 : vector<8x32xf32>
    %cst_94 = arith.constant dense<0.000000e+00> : vector<8xf32>
    %178 = vector.multi_reduction <add>, %177, %cst_94 [1] : vector<8x32xf32> to vector<8xf32>
    %179 = vector.shape_cast %178 : vector<8xf32> to vector<8x1xf32>
    %cst_95 = arith.constant 3.200000e+01 : f32
    %180 = vector.broadcast %cst_95 : f32 to vector<8x1xf32>
    %181 = arith.divf %179, %180 : vector<8x1xf32>
    %182 = vector.broadcast %174 : vector<8x1xf32> to vector<8x32xf32>
    %183 = arith.subf %170, %182 : vector<8x32xf32>
    %cst_96 = arith.constant 9.99999997E-7 : f32
    %184 = vector.broadcast %cst_96 : f32 to vector<8x1xf32>
    %185 = arith.addf %181, %184 : vector<8x1xf32>
    %186 = math.rsqrt %185 : vector<8x1xf32>
    %187 = vector.broadcast %186 : vector<8x1xf32> to vector<8x32xf32>
    %188 = arith.mulf %183, %187 : vector<8x32xf32>
    %189 = vector.broadcast %23 : vector<1x32xf32> to vector<8x32xf32>
    %190 = arith.mulf %188, %189 : vector<8x32xf32>
    %191 = vector.broadcast %25 : vector<1x32xf32> to vector<8x32xf32>
    %192 = arith.addf %190, %191 : vector<8x32xf32>
    %c0_97 = arith.constant 0 : index
    %c0_98 = arith.constant 0 : index
    %193 = vector.load %arg21[%c0_97, %c0_98] : memref<8x32xf32, #tpu.memory_space<vmem>>, vector<8x32xf32>
    tpu.vector_store %arg21[%c0_97, %c0_98], %192 {strides = array<i32>} : memref<8x32xf32, #tpu.memory_space<vmem>>, vector<8x32xf32>,
    %c1_i32 = arith.constant 1 : i32
    %194 = arith.cmpi eq, %arg1, %c1_i32 : i32
    %195 = arith.extui %194 : i1 to i32
    %c0_i32_99 = arith.constant 0 : i32
    %196 = arith.cmpi ne, %195, %c0_i32_99 : i32
    scf.if %196 {
      %c0_100 = arith.constant 0 : index
      %c0_101 = arith.constant 0 : index
      %197 = vector.load %arg21[%c0_100, %c0_101] : memref<8x32xf32, #tpu.memory_space<vmem>>, vector<8x32xf32>
      %c0_102 = arith.constant 0 : index
      %c0_103 = arith.constant 0 : index
      %c0_104 = arith.constant 0 : index
      %198 = vector.load %arg20[%c0_102, %c0_103, %c0_104] : memref<1x8x32xf32, #tpu.memory_space<vmem>>, vector<1x8x32xf32>
      %199 = vector.shape_cast %198 : vector<1x8x32xf32> to vector<8x32xf32>
      %200 = vector.shape_cast %197 : vector<8x32xf32> to vector<1x8x32xf32>
      tpu.vector_store %arg20[%c0_102, %c0_103, %c0_104], %200 {strides = array<i32>} : memref<1x8x32xf32, #tpu.memory_space<vmem>>, vector<1x8x32xf32>,
    } else {
    }
    return
  }
  func.func @transform_0(%arg0: i32, %arg1: i32) -> (i32, i32, i32) {
    %c0_i32 = arith.constant 0 : i32
    %c0_i32_0 = arith.constant 0 : i32
    %c0_i32_1 = arith.constant 0 : i32
    return %arg0, %c0_i32, %c0_i32_0 : i32, i32, i32
  }
  func.func @transform_1(%arg0: i32, %arg1: i32) -> (i32, i32, i32) {
    %c0_i32 = arith.constant 0 : i32
    %c0_i32_0 = arith.constant 0 : i32
    %c0_i32_1 = arith.constant 0 : i32
    return %arg0, %c0_i32, %c0_i32_0 : i32, i32, i32
  }
  func.func @transform_2(%arg0: i32, %arg1: i32) -> (i32, i32, i32) {
    %c0_i32 = arith.constant 0 : i32
    %c0_i32_0 = arith.constant 0 : i32
    %c0_i32_1 = arith.constant 0 : i32
    return %arg1, %c0_i32, %c0_i32_0 : i32, i32, i32
  }
  func.func @transform_3(%arg0: i32, %arg1: i32) -> (i32, i32, i32) {
    %c0_i32 = arith.constant 0 : i32
    %c0_i32_0 = arith.constant 0 : i32
    %c0_i32_1 = arith.constant 0 : i32
    return %arg1, %c0_i32, %c0_i32_0 : i32, i32, i32
  }
  func.func @transform_4(%arg0: i32, %arg1: i32) -> (i32, i32, i32) {
    %c0_i32 = arith.constant 0 : i32
    %c0_i32_0 = arith.constant 0 : i32
    %c0_i32_1 = arith.constant 0 : i32
    return %arg1, %c0_i32, %c0_i32_0 : i32, i32, i32
  }
  func.func @transform_5(%arg0: i32, %arg1: i32) -> (i32, i32, i32) {
    %c0_i32 = arith.constant 0 : i32
    %c0_i32_0 = arith.constant 0 : i32
    %c0_i32_1 = arith.constant 0 : i32
    return %arg1, %c0_i32, %c0_i32_0 : i32, i32, i32
  }
  func.func @transform_6(%arg0: i32, %arg1: i32) -> (i32, i32, i32) {
    %c0_i32 = arith.constant 0 : i32
    %c0_i32_0 = arith.constant 0 : i32
    %c0_i32_1 = arith.constant 0 : i32
    return %arg1, %c0_i32, %c0_i32_0 : i32, i32, i32
  }
  func.func @transform_7(%arg0: i32, %arg1: i32) -> (i32, i32, i32) {
    %c0_i32 = arith.constant 0 : i32
    %c0_i32_0 = arith.constant 0 : i32
    %c0_i32_1 = arith.constant 0 : i32
    return %arg1, %c0_i32, %c0_i32_0 : i32, i32, i32
  }
  func.func @transform_8(%arg0: i32, %arg1: i32) -> (i32, i32, i32) {
    %c0_i32 = arith.constant 0 : i32
    %c0_i32_0 = arith.constant 0 : i32
    %c0_i32_1 = arith.constant 0 : i32
    return %arg1, %c0_i32, %c0_i32_0 : i32, i32, i32
  }
  func.func @transform_9(%arg0: i32, %arg1: i32) -> (i32, i32, i32) {
    %c0_i32 = arith.constant 0 : i32
    %c0_i32_0 = arith.constant 0 : i32
    %c0_i32_1 = arith.constant 0 : i32
    return %arg1, %c0_i32, %c0_i32_0 : i32, i32, i32
  }
  func.func @transform_10(%arg0: i32, %arg1: i32) -> (i32, i32, i32) {
    %c0_i32 = arith.constant 0 : i32
    %c0_i32_0 = arith.constant 0 : i32
    %c0_i32_1 = arith.constant 0 : i32
    return %arg1, %c0_i32, %c0_i32_0 : i32, i32, i32
  }
  func.func @transform_11(%arg0: i32, %arg1: i32) -> (i32, i32, i32) {
    %c0_i32 = arith.constant 0 : i32
    %c0_i32_0 = arith.constant 0 : i32
    %c0_i32_1 = arith.constant 0 : i32
    return %arg1, %c0_i32, %c0_i32_0 : i32, i32, i32
  }
  func.func @transform_12(%arg0: i32, %arg1: i32) -> (i32, i32, i32) {
    %c0_i32 = arith.constant 0 : i32
    %c0_i32_0 = arith.constant 0 : i32
    %c0_i32_1 = arith.constant 0 : i32
    return %arg1, %c0_i32, %c0_i32_0 : i32, i32, i32
  }
  func.func @transform_13(%arg0: i32, %arg1: i32) -> (i32, i32, i32) {
    %c0_i32 = arith.constant 0 : i32
    %c0_i32_0 = arith.constant 0 : i32
    %c0_i32_1 = arith.constant 0 : i32
    return %arg1, %c0_i32, %c0_i32_0 : i32, i32, i32
  }
  func.func @transform_14(%arg0: i32, %arg1: i32) -> (i32, i32, i32) {
    %c0_i32 = arith.constant 0 : i32
    %c0_i32_0 = arith.constant 0 : i32
    %c0_i32_1 = arith.constant 0 : i32
    return %arg1, %c0_i32, %c0_i32_0 : i32, i32, i32
  }
  func.func @transform_15(%arg0: i32, %arg1: i32) -> (i32, i32, i32) {
    %c0_i32 = arith.constant 0 : i32
    %c0_i32_0 = arith.constant 0 : i32
    %c0_i32_1 = arith.constant 0 : i32
    return %arg1, %c0_i32, %c0_i32_0 : i32, i32, i32
  }
  func.func @transform_16(%arg0: i32, %arg1: i32) -> (i32, i32, i32) {
    %c0_i32 = arith.constant 0 : i32
    %c0_i32_0 = arith.constant 0 : i32
    %c0_i32_1 = arith.constant 0 : i32
    return %arg1, %c0_i32, %c0_i32_0 : i32, i32, i32
  }
  func.func @transform_17(%arg0: i32, %arg1: i32) -> (i32, i32, i32) {
    %c0_i32 = arith.constant 0 : i32
    %c0_i32_0 = arith.constant 0 : i32
    %c0_i32_1 = arith.constant 0 : i32
    return %arg1, %c0_i32, %c0_i32_0 : i32, i32, i32
  }
  func.func @transform_18(%arg0: i32, %arg1: i32) -> (i32, i32, i32) {
    %c0_i32 = arith.constant 0 : i32
    %c0_i32_0 = arith.constant 0 : i32
    %c0_i32_1 = arith.constant 0 : i32
    return %arg0, %c0_i32, %c0_i32_0 : i32, i32, i32
  }
}

</mosaic_0001>

<llo_original>
// kernel: tpu_custom_call.1
$region0: #{tpu_custom_call.1}
  #allocation0 [shape = 'u32[]', space=smem, size = 0x4, offset = 0x4, fixed_abs, tag = 'smem constant byte address 0x4 - core index']
  #allocation1 [shape = 'u32[144,128]{1,0:T(1,128)}', space=vmem, size = 0x12000, scoped, tag = 'internal scratch']
  #allocation2 [shape = 'f32[8,32]{1,0:T(8,128)}', space=vmem, size = 0x1000, scoped, tag = 'scratch operand']
  %s0 = inlined_call_operand.hbm [shape: f32[2,1,8], index: 0, kind: input, shape index: {}]
  %s1 = inlined_call_operand.hbm [shape: f32[2,8,32], index: 1, kind: input, shape index: {}]
  %s2 = inlined_call_operand.vmem [shape: f32[2,32,32], index: 2, kind: input, shape index: {}]
  %s3 = inlined_call_operand.vmem [shape: f32[2,1,32], index: 3, kind: input, shape index: {}]
  %s4 = inlined_call_operand.vmem [shape: f32[2,32,32], index: 4, kind: input, shape index: {}]
  %s5 = inlined_call_operand.vmem [shape: f32[2,1,32], index: 5, kind: input, shape index: {}]
  %s6 = inlined_call_operand.vmem [shape: f32[2,32,32], index: 6, kind: input, shape index: {}]
  %s7 = inlined_call_operand.vmem [shape: f32[2,1,32], index: 7, kind: input, shape index: {}]
  %s8 = inlined_call_operand.hbm [shape: f32[2,32,32], index: 8, kind: input, shape index: {}]
  %s9 = inlined_call_operand.vmem [shape: f32[2,1,32], index: 9, kind: input, shape index: {}]
  %s10 = inlined_call_operand.hbm [shape: f32[2,32,64], index: 10, kind: input, shape index: {}]
  %s11 = inlined_call_operand.vmem [shape: f32[2,1,64], index: 11, kind: input, shape index: {}]
  %s12 = inlined_call_operand.vmem [shape: f32[2,64,32], index: 12, kind: input, shape index: {}]
  %s13 = inlined_call_operand.vmem [shape: f32[2,1,32], index: 13, kind: input, shape index: {}]
  %s14 = inlined_call_operand.vmem [shape: f32[2,1,32], index: 14, kind: input, shape index: {}]
  %s15 = inlined_call_operand.vmem [shape: f32[2,1,32], index: 15, kind: input, shape index: {}]
  %s16 = inlined_call_operand.vmem [shape: f32[2,1,32], index: 16, kind: input, shape index: {}]
  %s17 = inlined_call_operand.vmem [shape: f32[2,1,32], index: 17, kind: input, shape index: {}]
  %s18 = inlined_call_operand.hbm [shape: f32[2,8,32], index: 18, kind: output, shape index: {}]
  %s19 = sld [smem:[#allocation0]]
  $region129: #{tpu_custom_call.1} parent=0
    _
  %s21 = ssub.s32 1, %s19
  %s22 = scalar_select 0, %s21, %s19
  $region1: #{tpu_custom_call.1} parent=0
    #allocation3 [shape = 'u8[1024]{0}', space=vmem, size = 0x400, scoped, tag = 'input window, operand 0']
    #allocation4 [shape = 's32[2]{0}', space=sflag, size = 0x8, scoped, tag = 'scoped memory for tpu_custom_call.1']
    #allocation5 [shape = 's32[2]{0}', space=sflag, size = 0x8, scoped, tag = 'scoped memory for tpu_custom_call.1']
    #allocation6 [shape = 'u8[8192]{0}', space=vmem, size = 0x2000, scoped, tag = 'input window, operand 1']
    #allocation7 [shape = 's32[2]{0}', space=sflag, size = 0x8, scoped, tag = 'scoped memory for tpu_custom_call.1']
    #allocation8 [shape = 'u8[32768]{0}', space=vmem, size = 0x8000, scoped, tag = 'input window, operand 8']
    #allocation9 [shape = 'u8[32768]{0}', space=vmem, size = 0x8000, scoped, tag = 'input window, operand 10']
    #allocation10 [shape = 's32[2]{0}', space=sflag, size = 0x8, scoped, tag = 'scoped memory for tpu_custom_call.1']
    #allocation11 [shape = 'u8[8192]{0}', space=vmem, size = 0x2000, scoped, tag = 'output window, operand 0']
    %23 = vsyncpa [#allocation4], 0
    %s24 = scalar_lea.sflag [#allocation4], 1
    %25 = vsyncpa %s24, 0
    %26 = vsyncpa [#allocation7], 0
    %s27 = scalar_lea.sflag [#allocation7], 1
    %28 = vsyncpa %s27, 0
    %29 = vsyncpa [#allocation10], 0
    %s30 = scalar_lea.sflag [#allocation10], 1
    %31 = vsyncpa %s30, 0
    %32 = vsyncpa [#allocation5], 0
    %s33 = scalar_lea.sflag [#allocation5], 1
    %34 = vsyncpa %s33, 0
    loop: start=0, step=1, limit=6
    $region2: #{tpu_custom_call.1} parent=1 // loop_pre_header
      _
    $region3: #{tpu_custom_call.1} parent=1 // loop_header
      %s36 = sphi 0, %s40
      %p37 = scmp.ge.s32.totalorder %s36, 6
      %s43 = sphi 0, %s55
      %s44 = sphi 0, %s51
      %s45 = sphi 0, %s43
      %s46 = sphi 0, %s44
      %s47 = sphi 0, %s45
      %s48 = sphi 0, %s46
      %s58 = sphi 0, %s60
      %s61 = sphi 0, %s58
      %s62 = sphi 0, %s61
      %s78 = sphi 0, %s62
      %s84 = sphi 0, %s86
      %s87 = sphi 0, %s84
      %s88 = sphi 0, %s87
      %s104 = sphi 0, %s88
      %s110 = sphi 0, %s112
      %s113 = sphi 0, %s110
      %s114 = sphi 0, %s113
      %s130 = sphi 0, %s114
      %s136 = sphi 0, %s138
      %s139 = sphi 0, %s136
      %s140 = sphi 0, %s139
      %s156 = sphi 0, %s140
      %s162 = sphi 0, %s164
      %s165 = sphi 0, %s162
      %s166 = sphi 0, %s165
      %s182 = sphi 0, %s166
      %s188 = sphi 0, %s190
      %s191 = sphi 0, %s188
      %s192 = sphi 0, %s191
      %s208 = sphi 0, %s192
      %s214 = sphi 0, %s216
      %s217 = sphi 0, %s214
      %s218 = sphi 0, %s217
      %s234 = sphi 0, %s218
      %s240 = sphi 0, %s242
      %s243 = sphi 0, %s240
      %s244 = sphi 0, %s243
      %s260 = sphi 0, %s244
      %s266 = sphi 0, %s268
      %s269 = sphi 0, %s266
      %s270 = sphi 0, %s269
      %s286 = sphi 0, %s270
      %s292 = sphi 0, %s294
      %s295 = sphi 0, %s292
      %s296 = sphi 0, %s295
      %s312 = sphi 0, %s296
      %s318 = sphi 0, %s320
      %s321 = sphi 0, %s318
      %s322 = sphi 0, %s321
      %s338 = sphi 0, %s322
      %s344 = sphi 0, %s346
      %s347 = sphi 0, %s344
      %s348 = sphi 0, %s347
      %s364 = sphi 0, %s348
      %s370 = sphi 0, %s372
      %s373 = sphi 0, %s370
      %s374 = sphi 0, %s373
      %s390 = sphi 0, %s374
      %s396 = sphi 0, %s398
      %s399 = sphi 0, %s396
      %s400 = sphi 0, %s399
      %s416 = sphi 0, %s400
      %s422 = sphi 0, %s424
      %s425 = sphi 0, %s422
      %s426 = sphi 0, %s425
      %s442 = sphi 0, %s426
      %s448 = sphi 0, %s450
      %s451 = sphi 0, %s448
      %s452 = sphi 0, %s451
      %s468 = sphi 0, %s452
      %s474 = sphi 0, %s476
      %s477 = sphi 0, %s474
      %s478 = sphi 0, %s477
      %s494 = sphi 0, %s478
      %s500 = sphi 0, %s502
      %s503 = sphi 0, %s500
      %s504 = sphi 0, %s503
      %s520 = sphi 0, %s504
      %s526 = sphi 0, %s528
      %s529 = sphi 0, %s526
      %s530 = sphi 0, %s529
      %s546 = sphi 0, %s530
    $region4: #{tpu_custom_call.1} parent=1 // loop_header_branch
      %39 = sbr.rel (%p37) target = $region8
    $region5: #{tpu_custom_call.1} parent=1 // loop_body
      %s41 = ssub.s32 %s36, 1
      %s42 = ssub.s32 %s36, 2
      %s49 = sadd.s32 1, %s44
      %p50 = scmp.ge.s32.totalorder %s49, 2
      %s51 = scalar_select %p50, 0, %s49
      %s52 = sadd.s32 1, %s43
      %s53 = scalar_select %p50, %s52, %s43
      %p54 = scmp.ge.s32.totalorder %s53, 2
      %s55 = scalar_select %p54, 0, %s53
      %s56 = ssub.s32 %s43, %s55
      %p57 = scmp.eq.s32.totalorder %s56, 0
      %s59 = sadd.s32 %s58, 1
      %s60 = scalar_select %p57, %s58, %s59
      %p63 = pneg %p57
      %p64 = scmp.eq.s32.totalorder %s36, 3
      %p65 = por %p63, %p64
      %p66 = scmp.ne.s32.totalorder %s58, %s61
      %p67 = scmp.eq.s32.totalorder %s36, 0
      %p68 = por %p66, %p67
      %p69 = scmp.ne.s32.totalorder %s58, %s61
      %p70 = scmp.eq.s32.totalorder %s41, 3
      %p71 = por %p69, %p70
      %p72 = scmp.ne.s32.totalorder %s61, %s62
      %p73 = scmp.eq.s32.totalorder %s41, 0
      %p74 = por %p72, %p73
      %p75 = scmp.ne.s32.totalorder %s61, %s62
      %p76 = scmp.eq.s32.totalorder %s42, 3
      %p77 = por %p75, %p76
      %p79 = scmp.ne.s32.totalorder %s62, %s78
      %p80 = scmp.eq.s32.totalorder %s42, 0
      %p81 = por %p79, %p80
      %s82 = ssub.s32 %s43, %s55
      %p83 = scmp.eq.s32.totalorder %s82, 0
      %s85 = sadd.s32 %s84, 1
      %s86 = scalar_select %p83, %s84, %s85
      %p89 = pneg %p83
      %p90 = scmp.eq.s32.totalorder %s36, 3
      %p91 = por %p89, %p90
      %p92 = scmp.ne.s32.totalorder %s84, %s87
      %p93 = scmp.eq.s32.totalorder %s36, 0
      %p94 = por %p92, %p93
      %p95 = scmp.ne.s32.totalorder %s84, %s87
      %p96 = scmp.eq.s32.totalorder %s41, 3
      %p97 = por %p95, %p96
      %p98 = scmp.ne.s32.totalorder %s87, %s88
      %p99 = scmp.eq.s32.totalorder %s41, 0
      %p100 = por %p98, %p99
      %p101 = scmp.ne.s32.totalorder %s87, %s88
      %p102 = scmp.eq.s32.totalorder %s42, 3
      %p103 = por %p101, %p102
      %p105 = scmp.ne.s32.totalorder %s88, %s104
      %p106 = scmp.eq.s32.totalorder %s42, 0
      %p107 = por %p105, %p106
      %s108 = ssub.s32 %s44, %s51
      %p109 = scmp.eq.s32.totalorder %s108, 0
      %s111 = sadd.s32 %s110, 1
      %s112 = scalar_select %p109, %s110, %s111
      %p115 = pneg %p109
      %p116 = scmp.eq.s32.totalorder %s36, 3
      %p117 = por %p115, %p116
      %p118 = scmp.ne.s32.totalorder %s110, %s113
      %p119 = scmp.eq.s32.totalorder %s36, 0
      %p120 = por %p118, %p119
      %p121 = scmp.ne.s32.totalorder %s110, %s113
      %p122 = scmp.eq.s32.totalorder %s41, 3
      %p123 = por %p121, %p122
      %p124 = scmp.ne.s32.totalorder %s113, %s114
      %p125 = scmp.eq.s32.totalorder %s41, 0
      %p126 = por %p124, %p125
      %p127 = scmp.ne.s32.totalorder %s113, %s114
      %p128 = scmp.eq.s32.totalorder %s42, 3
      %p129 = por %p127, %p128
      %p131 = scmp.ne.s32.totalorder %s114, %s130
      %p132 = scmp.eq.s32.totalorder %s42, 0
      %p133 = por %p131, %p132
      %s134 = ssub.s32 %s44, %s51
      %p135 = scmp.eq.s32.totalorder %s134, 0
      %s137 = sadd.s32 %s136, 1
      %s138 = scalar_select %p135, %s136, %s137
      %p141 = pneg %p135
      %p142 = scmp.eq.s32.totalorder %s36, 3
      %p143 = por %p141, %p142
      %p144 = scmp.ne.s32.totalorder %s136, %s139
      %p145 = scmp.eq.s32.totalorder %s36, 0
      %p146 = por %p144, %p145
      %p147 = scmp.ne.s32.totalorder %s136, %s139
      %p148 = scmp.eq.s32.totalorder %s41, 3
      %p149 = por %p147, %p148
      %p150 = scmp.ne.s32.totalorder %s139, %s140
      %p151 = scmp.eq.s32.totalorder %s41, 0
      %p152 = por %p150, %p151
      %p153 = scmp.ne.s32.totalorder %s139, %s140
      %p154 = scmp.eq.s32.totalorder %s42, 3
      %p155 = por %p153, %p154
      %p157 = scmp.ne.s32.totalorder %s140, %s156
      %p158 = scmp.eq.s32.totalorder %s42, 0
      %p159 = por %p157, %p158
      %s160 = ssub.s32 %s44, %s51
      %p161 = scmp.eq.s32.totalorder %s160, 0
      %s163 = sadd.s32 %s162, 1
      %s164 = scalar_select %p161, %s162, %s163
      %p167 = pneg %p161
      %p168 = scmp.eq.s32.totalorder %s36, 3
      %p169 = por %p167, %p168
      %p170 = scmp.ne.s32.totalorder %s162, %s165
      %p171 = scmp.eq.s32.totalorder %s36, 0
      %p172 = por %p170, %p171
      %p173 = scmp.ne.s32.totalorder %s162, %s165
      %p174 = scmp.eq.s32.totalorder %s41, 3
      %p175 = por %p173, %p174
      %p176 = scmp.ne.s32.totalorder %s165, %s166
      %p177 = scmp.eq.s32.totalorder %s41, 0
      %p178 = por %p176, %p177
      %p179 = scmp.ne.s32.totalorder %s165, %s166
      %p180 = scmp.eq.s32.totalorder %s42, 3
      %p181 = por %p179, %p180
      %p183 = scmp.ne.s32.totalorder %s166, %s182
      %p184 = scmp.eq.s32.totalorder %s42, 0
      %p185 = por %p183, %p184
      %s186 = ssub.s32 %s44, %s51
      %p187 = scmp.eq.s32.totalorder %s186, 0
      %s189 = sadd.s32 %s188, 1
      %s190 = scalar_select %p187, %s188, %s189
      %p193 = pneg %p187
      %p194 = scmp.eq.s32.totalorder %s36, 3
      %p195 = por %p193, %p194
      %p196 = scmp.ne.s32.totalorder %s188, %s191
      %p197 = scmp.eq.s32.totalorder %s36, 0
      %p198 = por %p196, %p197
      %p199 = scmp.ne.s32.totalorder %s188, %s191
      %p200 = scmp.eq.s32.totalorder %s41, 3
      %p201 = por %p199, %p200
      %p202 = scmp.ne.s32.totalorder %s191, %s192
      %p203 = scmp.eq.s32.totalorder %s41, 0
      %p204 = por %p202, %p203
      %p205 = scmp.ne.s32.totalorder %s191, %s192
      %p206 = scmp.eq.s32.totalorder %s42, 3
      %p207 = por %p205, %p206
      %p209 = scmp.ne.s32.totalorder %s192, %s208
      %p210 = scmp.eq.s32.totalorder %s42, 0
      %p211 = por %p209, %p210
      %s212 = ssub.s32 %s44, %s51
      %p213 = scmp.eq.s32.totalorder %s212, 0
      %s215 = sadd.s32 %s214, 1
      %s216 = scalar_select %p213, %s214, %s215
      %p219 = pneg %p213
      %p220 = scmp.eq.s32.totalorder %s36, 3
      %p221 = por %p219, %p220
      %p222 = scmp.ne.s32.totalorder %s214, %s217
      %p223 = scmp.eq.s32.totalorder %s36, 0
      %p224 = por %p222, %p223
      %p225 = scmp.ne.s32.totalorder %s214, %s217
      %p226 = scmp.eq.s32.totalorder %s41, 3
      %p227 = por %p225, %p226
      %p228 = scmp.ne.s32.totalorder %s217, %s218
      %p229 = scmp.eq.s32.totalorder %s41, 0
      %p230 = por %p228, %p229
      %p231 = scmp.ne.s32.totalorder %s217, %s218
      %p232 = scmp.eq.s32.totalorder %s42, 3
      %p233 = por %p231, %p232
      %p235 = scmp.ne.s32.totalorder %s218, %s234
      %p236 = scmp.eq.s32.totalorder %s42, 0
      %p237 = por %p235, %p236
      %s238 = ssub.s32 %s44, %s51
      %p239 = scmp.eq.s32.totalorder %s238, 0
      %s241 = sadd.s32 %s240, 1
      %s242 = scalar_select %p239, %s240, %s241
      %p245 = pneg %p239
      %p246 = scmp.eq.s32.totalorder %s36, 3
      %p247 = por %p245, %p246
      %p248 = scmp.ne.s32.totalorder %s240, %s243
      %p249 = scmp.eq.s32.totalorder %s36, 0
      %p250 = por %p248, %p249
      %p251 = scmp.ne.s32.totalorder %s240, %s243
      %p252 = scmp.eq.s32.totalorder %s41, 3
      %p253 = por %p251, %p252
      %p254 = scmp.ne.s32.totalorder %s243, %s244
      %p255 = scmp.eq.s32.totalorder %s41, 0
      %p256 = por %p254, %p255
      %p257 = scmp.ne.s32.totalorder %s243, %s244
      %p258 = scmp.eq.s32.totalorder %s42, 3
      %p259 = por %p257, %p258
      %p261 = scmp.ne.s32.totalorder %s244, %s260
      %p262 = scmp.eq.s32.totalorder %s42, 0
      %p263 = por %p261, %p262
      %s264 = ssub.s32 %s44, %s51
      %p265 = scmp.eq.s32.totalorder %s264, 0
      %s267 = sadd.s32 %s266, 1
      %s268 = scalar_select %p265, %s266, %s267
      %p271 = pneg %p265
      %p272 = scmp.eq.s32.totalorder %s36, 3
      %p273 = por %p271, %p272
      %p274 = scmp.ne.s32.totalorder %s266, %s269
      %p275 = scmp.eq.s32.totalorder %s36, 0
      %p276 = por %p274, %p275
      %p277 = scmp.ne.s32.totalorder %s266, %s269
      %p278 = scmp.eq.s32.totalorder %s41, 3
      %p279 = por %p277, %p278
      %p280 = scmp.ne.s32.totalorder %s269, %s270
      %p281 = scmp.eq.s32.totalorder %s41, 0
      %p282 = por %p280, %p281
      %p283 = scmp.ne.s32.totalorder %s269, %s270
      %p284 = scmp.eq.s32.totalorder %s42, 3
      %p285 = por %p283, %p284
      %p287 = scmp.ne.s32.totalorder %s270, %s286
      %p288 = scmp.eq.s32.totalorder %s42, 0
      %p289 = por %p287, %p288
      %s290 = ssub.s32 %s44, %s51
      %p291 = scmp.eq.s32.totalorder %s290, 0
      %s293 = sadd.s32 %s292, 1
      %s294 = scalar_select %p291, %s292, %s293
      %p297 = pneg %p291
      %p298 = scmp.eq.s32.totalorder %s36, 3
      %p299 = por %p297, %p298
      %p300 = scmp.ne.s32.totalorder %s292, %s295
      %p301 = scmp.eq.s32.totalorder %s36, 0
      %p302 = por %p300, %p301
      %p303 = scmp.ne.s32.totalorder %s292, %s295
      %p304 = scmp.eq.s32.totalorder %s41, 3
      %p305 = por %p303, %p304
      %p306 = scmp.ne.s32.totalorder %s295, %s296
      %p307 = scmp.eq.s32.totalorder %s41, 0
      %p308 = por %p306, %p307
      %p309 = scmp.ne.s32.totalorder %s295, %s296
      %p310 = scmp.eq.s32.totalorder %s42, 3
      %p311 = por %p309, %p310
      %p313 = scmp.ne.s32.totalorder %s296, %s312
      %p314 = scmp.eq.s32.totalorder %s42, 0
      %p315 = por %p313, %p314
      %s316 = ssub.s32 %s44, %s51
      %p317 = scmp.eq.s32.totalorder %s316, 0
      %s319 = sadd.s32 %s318, 1
      %s320 = scalar_select %p317, %s318, %s319
      %p323 = pneg %p317
      %p324 = scmp.eq.s32.totalorder %s36, 3
      %p325 = por %p323, %p324
      %p326 = scmp.ne.s32.totalorder %s318, %s321
      %p327 = scmp.eq.s32.totalorder %s36, 0
      %p328 = por %p326, %p327
      %p329 = scmp.ne.s32.totalorder %s318, %s321
      %p330 = scmp.eq.s32.totalorder %s41, 3
      %p331 = por %p329, %p330
      %p332 = scmp.ne.s32.totalorder %s321, %s322
      %p333 = scmp.eq.s32.totalorder %s41, 0
      %p334 = por %p332, %p333
      %p335 = scmp.ne.s32.totalorder %s321, %s322
      %p336 = scmp.eq.s32.totalorder %s42, 3
      %p337 = por %p335, %p336
      %p339 = scmp.ne.s32.totalorder %s322, %s338
      %p340 = scmp.eq.s32.totalorder %s42, 0
      %p341 = por %p339, %p340
      %s342 = ssub.s32 %s44, %s51
      %p343 = scmp.eq.s32.totalorder %s342, 0
      %s345 = sadd.s32 %s344, 1
      %s346 = scalar_select %p343, %s344, %s345
      %p349 = pneg %p343
      %p350 = scmp.eq.s32.totalorder %s36, 3
      %p351 = por %p349, %p350
      %p352 = scmp.ne.s32.totalorder %s344, %s347
      %p353 = scmp.eq.s32.totalorder %s36, 0
      %p354 = por %p352, %p353
      %p355 = scmp.ne.s32.totalorder %s344, %s347
      %p356 = scmp.eq.s32.totalorder %s41, 3
      %p357 = por %p355, %p356
      %p358 = scmp.ne.s32.totalorder %s347, %s348
      %p359 = scmp.eq.s32.totalorder %s41, 0
      %p360 = por %p358, %p359
      %p361 = scmp.ne.s32.totalorder %s347, %s348
      %p362 = scmp.eq.s32.totalorder %s42, 3
      %p363 = por %p361, %p362
      %p365 = scmp.ne.s32.totalorder %s348, %s364
      %p366 = scmp.eq.s32.totalorder %s42, 0
      %p367 = por %p365, %p366
      %s368 = ssub.s32 %s44, %s51
      %p369 = scmp.eq.s32.totalorder %s368, 0
      %s371 = sadd.s32 %s370, 1
      %s372 = scalar_select %p369, %s370, %s371
      %p375 = pneg %p369
      %p376 = scmp.eq.s32.totalorder %s36, 3
      %p377 = por %p375, %p376
      %p378 = scmp.ne.s32.totalorder %s370, %s373
      %p379 = scmp.eq.s32.totalorder %s36, 0
      %p380 = por %p378, %p379
      %p381 = scmp.ne.s32.totalorder %s370, %s373
      %p382 = scmp.eq.s32.totalorder %s41, 3
      %p383 = por %p381, %p382
      %p384 = scmp.ne.s32.totalorder %s373, %s374
      %p385 = scmp.eq.s32.totalorder %s41, 0
      %p386 = por %p384, %p385
      %p387 = scmp.ne.s32.totalorder %s373, %s374
      %p388 = scmp.eq.s32.totalorder %s42, 3
      %p389 = por %p387, %p388
      %p391 = scmp.ne.s32.totalorder %s374, %s390
      %p392 = scmp.eq.s32.totalorder %s42, 0
      %p393 = por %p391, %p392
      %s394 = ssub.s32 %s44, %s51
      %p395 = scmp.eq.s32.totalorder %s394, 0
      %s397 = sadd.s32 %s396, 1
      %s398 = scalar_select %p395, %s396, %s397
      %p401 = pneg %p395
      %p402 = scmp.eq.s32.totalorder %s36, 3
      %p403 = por %p401, %p402
      %p404 = scmp.ne.s32.totalorder %s396, %s399
      %p405 = scmp.eq.s32.totalorder %s36, 0
      %p406 = por %p404, %p405
      %p407 = scmp.ne.s32.totalorder %s396, %s399
      %p408 = scmp.eq.s32.totalorder %s41, 3
      %p409 = por %p407, %p408
      %p410 = scmp.ne.s32.totalorder %s399, %s400
      %p411 = scmp.eq.s32.totalorder %s41, 0
      %p412 = por %p410, %p411
      %p413 = scmp.ne.s32.totalorder %s399, %s400
      %p414 = scmp.eq.s32.totalorder %s42, 3
      %p415 = por %p413, %p414
      %p417 = scmp.ne.s32.totalorder %s400, %s416
      %p418 = scmp.eq.s32.totalorder %s42, 0
      %p419 = por %p417, %p418
      %s420 = ssub.s32 %s44, %s51
      %p421 = scmp.eq.s32.totalorder %s420, 0
      %s423 = sadd.s32 %s422, 1
      %s424 = scalar_select %p421, %s422, %s423
      %p427 = pneg %p421
      %p428 = scmp.eq.s32.totalorder %s36, 3
      %p429 = por %p427, %p428
      %p430 = scmp.ne.s32.totalorder %s422, %s425
      %p431 = scmp.eq.s32.totalorder %s36, 0
      %p432 = por %p430, %p431
      %p433 = scmp.ne.s32.totalorder %s422, %s425
      %p434 = scmp.eq.s32.totalorder %s41, 3
      %p435 = por %p433, %p434
      %p436 = scmp.ne.s32.totalorder %s425, %s426
      %p437 = scmp.eq.s32.totalorder %s41, 0
      %p438 = por %p436, %p437
      %p439 = scmp.ne.s32.totalorder %s425, %s426
      %p440 = scmp.eq.s32.totalorder %s42, 3
      %p441 = por %p439, %p440
      %p443 = scmp.ne.s32.totalorder %s426, %s442
      %p444 = scmp.eq.s32.totalorder %s42, 0
      %p445 = por %p443, %p444
      %s446 = ssub.s32 %s44, %s51
      %p447 = scmp.eq.s32.totalorder %s446, 0
      %s449 = sadd.s32 %s448, 1
      %s450 = scalar_select %p447, %s448, %s449
      %p453 = pneg %p447
      %p454 = scmp.eq.s32.totalorder %s36, 3
      %p455 = por %p453, %p454
      %p456 = scmp.ne.s32.totalorder %s448, %s451
      %p457 = scmp.eq.s32.totalorder %s36, 0
      %p458 = por %p456, %p457
      %p459 = scmp.ne.s32.totalorder %s448, %s451
      %p460 = scmp.eq.s32.totalorder %s41, 3
      %p461 = por %p459, %p460
      %p462 = scmp.ne.s32.totalorder %s451, %s452
      %p463 = scmp.eq.s32.totalorder %s41, 0
      %p464 = por %p462, %p463
      %p465 = scmp.ne.s32.totalorder %s451, %s452
      %p466 = scmp.eq.s32.totalorder %s42, 3
      %p467 = por %p465, %p466
      %p469 = scmp.ne.s32.totalorder %s452, %s468
      %p470 = scmp.eq.s32.totalorder %s42, 0
      %p471 = por %p469, %p470
      %s472 = ssub.s32 %s44, %s51
      %p473 = scmp.eq.s32.totalorder %s472, 0
      %s475 = sadd.s32 %s474, 1
      %s476 = scalar_select %p473, %s474, %s475
      %p479 = pneg %p473
      %p480 = scmp.eq.s32.totalorder %s36, 3
      %p481 = por %p479, %p480
      %p482 = scmp.ne.s32.totalorder %s474, %s477
      %p483 = scmp.eq.s32.totalorder %s36, 0
      %p484 = por %p482, %p483
      %p485 = scmp.ne.s32.totalorder %s474, %s477
      %p486 = scmp.eq.s32.totalorder %s41, 3
      %p487 = por %p485, %p486
      %p488 = scmp.ne.s32.totalorder %s477, %s478
      %p489 = scmp.eq.s32.totalorder %s41, 0
      %p490 = por %p488, %p489
      %p491 = scmp.ne.s32.totalorder %s477, %s478
      %p492 = scmp.eq.s32.totalorder %s42, 3
      %p493 = por %p491, %p492
      %p495 = scmp.ne.s32.totalorder %s478, %s494
      %p496 = scmp.eq.s32.totalorder %s42, 0
      %p497 = por %p495, %p496
      %s498 = ssub.s32 %s44, %s51
      %p499 = scmp.eq.s32.totalorder %s498, 0
      %s501 = sadd.s32 %s500, 1
      %s502 = scalar_select %p499, %s500, %s501
      %p505 = pneg %p499
      %p506 = scmp.eq.s32.totalorder %s36, 3
      %p507 = por %p505, %p506
      %p508 = scmp.ne.s32.totalorder %s500, %s503
      %p509 = scmp.eq.s32.totalorder %s36, 0
      %p510 = por %p508, %p509
      %p511 = scmp.ne.s32.totalorder %s500, %s503
      %p512 = scmp.eq.s32.totalorder %s41, 3
      %p513 = por %p511, %p512
      %p514 = scmp.ne.s32.totalorder %s503, %s504
      %p515 = scmp.eq.s32.totalorder %s41, 0
      %p516 = por %p514, %p515
      %p517 = scmp.ne.s32.totalorder %s503, %s504
      %p518 = scmp.eq.s32.totalorder %s42, 3
      %p519 = por %p517, %p518
      %p521 = scmp.ne.s32.totalorder %s504, %s520
      %p522 = scmp.eq.s32.totalorder %s42, 0
      %p523 = por %p521, %p522
      %s524 = ssub.s32 %s43, %s55
      %p525 = scmp.eq.s32.totalorder %s524, 0
      %s527 = sadd.s32 %s526, 1
      %s528 = scalar_select %p525, %s526, %s527
      %p531 = pneg %p525
      %p532 = scmp.eq.s32.totalorder %s36, 3
      %p533 = por %p531, %p532
      %p534 = scmp.ne.s32.totalorder %s526, %s529
      %p535 = scmp.eq.s32.totalorder %s36, 0
      %p536 = por %p534, %p535
      %p537 = scmp.ne.s32.totalorder %s526, %s529
      %p538 = scmp.eq.s32.totalorder %s41, 3
      %p539 = por %p537, %p538
      %p540 = scmp.ne.s32.totalorder %s529, %s530
      %p541 = scmp.eq.s32.totalorder %s41, 0
      %p542 = por %p540, %p541
      %p543 = scmp.ne.s32.totalorder %s529, %s530
      %p544 = scmp.eq.s32.totalorder %s42, 3
      %p545 = por %p543, %p544
      %p547 = scmp.ne.s32.totalorder %s530, %s546
      %p548 = scmp.eq.s32.totalorder %s42, 0
      %p549 = por %p547, %p548
      %p550 = scmp.le.s32.totalorder 1, %s36
      %p551 = scmp.lt.s32.totalorder %s36, 5
      %p552 = pnand %p550, %p551
      %p553 = pneg %p552
      // Predicated region
      $region9: #{tpu_custom_call.1} parent=5 // pred_check
        _
      $region10: #{tpu_custom_call.1} parent=5 // pred_check_branch
        %555 = sbr.rel (%p552) target = $region12
      $region11: #{tpu_custom_call.1} parent=5 // pred_region
        %s556 = ssub.s32 %s36, 1
      $region12: #{tpu_custom_call.1} parent=5 // pred_fallthru
        _
      %p557 = scmp.lt.s32.totalorder %s36, 4
      // Predicated region
      $region13: #{tpu_custom_call.1} parent=5 // pred_check
        %p558 = pneg %p557
      $region14: #{tpu_custom_call.1} parent=5 // pred_check_branch
        %560 = sbr.rel (%p558) target = $region16
      $region15: #{tpu_custom_call.1} parent=5 // pred_region
        // Predicated region
        $region17: #{tpu_custom_call.1} parent=15 // pred_check
          %p561 = pneg %p68
        $region18: #{tpu_custom_call.1} parent=15 // pred_check_branch
          %563 = sbr.rel (%p561) target = $region20
        $region19: #{tpu_custom_call.1} parent=15 // pred_region
          %s564 = sand.u32 %s58, 1
          %s565 = scalar_lea.sflag [#allocation4], %s564
          %s566 = sand.u32 %s58, 1
          %s567 = scalar_lea.vmem [#allocation3], %s566
          %s569 = ssub.s32 16, 16
          %570 = vsyncadd %s565, %s569
          %s571 = smul.addr %s43, 16
          %s572 = scalar_lea.hbm %s0, %s571
          %s574 = sshll.u32 %s567, 4
          %s575 = int_to_ptr.vmem [resolvable:$true] %s574
          %577 = dma.hbm_to_vmem [thread:$0]  %s572, 16, %s575, %s565
        $region20: #{tpu_custom_call.1} parent=15 // pred_fallthru
          _
        // Predicated region
        $region21: #{tpu_custom_call.1} parent=15 // pred_check
          %p578 = pneg %p94
        $region22: #{tpu_custom_call.1} parent=15 // pred_check_branch
          %580 = sbr.rel (%p578) target = $region24
        $region23: #{tpu_custom_call.1} parent=15 // pred_region
          %s581 = sand.u32 %s36, 1
          %s582 = scalar_lea.sflag [#allocation7], %s581
          %s583 = sand.u32 %s84, 1
          %s584 = smul.addr %s583, 8
          %s585 = scalar_lea.vmem [#allocation6], %s584
          %s587 = ssub.s32 128, 128
          %588 = vsyncadd %s582, %s587
          %s589 = smul.addr %s43, 128
          %s590 = scalar_lea.hbm %s1, %s589
          %s592 = sshll.u32 %s585, 4
          %s593 = int_to_ptr.vmem [resolvable:$true] %s592
          %595 = dma.hbm_to_vmem [thread:$0]  %s590, 128, %s593, %s582
        $region24: #{tpu_custom_call.1} parent=15 // pred_fallthru
          _
        // Predicated region
        $region25: #{tpu_custom_call.1} parent=15 // pred_check
          %p596 = pneg %p120
        $region26: #{tpu_custom_call.1} parent=15 // pred_check_branch
          %598 = sbr.rel (%p596) target = $region28
        $region27: #{tpu_custom_call.1} parent=15 // pred_region
          %p599 = scmp.lt.s32.totalorder %s44, 1
          %s600 = scalar_select %p599, %s44, 1
          %s601 = smul.addr %s600, 4
          %s602 = smul.addr %s601, 8
          %s603 = scalar_lea.vmem %s2, %s602
        $region28: #{tpu_custom_call.1} parent=15 // pred_fallthru
          _
        // Predicated region
        $region29: #{tpu_custom_call.1} parent=15 // pred_check
          %p604 = pneg %p146
        $region30: #{tpu_custom_call.1} parent=15 // pred_check_branch
          %606 = sbr.rel (%p604) target = $region32
        $region31: #{tpu_custom_call.1} parent=15 // pred_region
          %p607 = scmp.lt.s32.totalorder %s44, 1
          %s608 = scalar_select %p607, %s44, 1
          %s609 = scalar_lea.vmem %s3, %s608
        $region32: #{tpu_custom_call.1} parent=15 // pred_fallthru
          _
        // Predicated region
        $region33: #{tpu_custom_call.1} parent=15 // pred_check
          %p610 = pneg %p172
        $region34: #{tpu_custom_call.1} parent=15 // pred_check_branch
          %612 = sbr.rel (%p610) target = $region36
        $region35: #{tpu_custom_call.1} parent=15 // pred_region
          %p613 = scmp.lt.s32.totalorder %s44, 1
          %s614 = scalar_select %p613, %s44, 1
          %s615 = smul.addr %s614, 4
          %s616 = smul.addr %s615, 8
          %s617 = scalar_lea.vmem %s4, %s616
        $region36: #{tpu_custom_call.1} parent=15 // pred_fallthru
          _
        // Predicated region
        $region37: #{tpu_custom_call.1} parent=15 // pred_check
          %p618 = pneg %p198
        $region38: #{tpu_custom_call.1} parent=15 // pred_check_branch
          %620 = sbr.rel (%p618) target = $region40
        $region39: #{tpu_custom_call.1} parent=15 // pred_region
          %p621 = scmp.lt.s32.totalorder %s44, 1
          %s622 = scalar_select %p621, %s44, 1
          %s623 = scalar_lea.vmem %s5, %s622
        $region40: #{tpu_custom_call.1} parent=15 // pred_fallthru
          _
        // Predicated region
        $region41: #{tpu_custom_call.1} parent=15 // pred_check
          %p624 = pneg %p224
        $region42: #{tpu_custom_call.1} parent=15 // pred_check_branch
          %626 = sbr.rel (%p624) target = $region44
        $region43: #{tpu_custom_call.1} parent=15 // pred_region
          %p627 = scmp.lt.s32.totalorder %s44, 1
          %s628 = scalar_select %p627, %s44, 1
          %s629 = smul.addr %s628, 4
          %s630 = smul.addr %s629, 8
          %s631 = scalar_lea.vmem %s6, %s630
        $region44: #{tpu_custom_call.1} parent=15 // pred_fallthru
          _
        // Predicated region
        $region45: #{tpu_custom_call.1} parent=15 // pred_check
          %p632 = pneg %p250
        $region46: #{tpu_custom_call.1} parent=15 // pred_check_branch
          %634 = sbr.rel (%p632) target = $region48
        $region47: #{tpu_custom_call.1} parent=15 // pred_region
          %p635 = scmp.lt.s32.totalorder %s44, 1
          %s636 = scalar_select %p635, %s44, 1
          %s637 = scalar_lea.vmem %s7, %s636
        $region48: #{tpu_custom_call.1} parent=15 // pred_fallthru
          _
        // Predicated region
        $region49: #{tpu_custom_call.1} parent=15 // pred_check
          %p638 = pneg %p276
        $region50: #{tpu_custom_call.1} parent=15 // pred_check_branch
          %640 = sbr.rel (%p638) target = $region52
        $region51: #{tpu_custom_call.1} parent=15 // pred_region
          %s641 = sand.u32 %s36, 1
          %s642 = scalar_lea.sflag [#allocation7], %s641
          %s643 = sand.u32 %s266, 1
          %s644 = smul.addr %s643, 32
          %s645 = scalar_lea.vmem [#allocation8], %s644
          %s647 = ssub.s32 512, 512
          %648 = vsyncadd %s642, %s647
          %s649 = smul.addr %s44, 4
          %s650 = smul.addr %s649, 128
          %s651 = scalar_lea.hbm %s8, %s650
          %s652 = sshll.u32 %s645, 4
          %s653 = int_to_ptr.vmem [resolvable:$true] %s652
          %658 = dma.hbm_to_vmem [thread:$0]  %s651, 512, %s653, %s642, 128, 128, 8
        $region52: #{tpu_custom_call.1} parent=15 // pred_fallthru
          _
        // Predicated region
        $region53: #{tpu_custom_call.1} parent=15 // pred_check
          %p659 = pneg %p302
        $region54: #{tpu_custom_call.1} parent=15 // pred_check_branch
          %661 = sbr.rel (%p659) target = $region56
        $region55: #{tpu_custom_call.1} parent=15 // pred_region
          %p662 = scmp.lt.s32.totalorder %s44, 1
          %s663 = scalar_select %p662, %s44, 1
          %s664 = scalar_lea.vmem %s9, %s663
        $region56: #{tpu_custom_call.1} parent=15 // pred_fallthru
          _
        // Predicated region
        $region57: #{tpu_custom_call.1} parent=15 // pred_check
          %p665 = pneg %p328
        $region58: #{tpu_custom_call.1} parent=15 // pred_check_branch
          %667 = sbr.rel (%p665) target = $region60
        $region59: #{tpu_custom_call.1} parent=15 // pred_region
          %s668 = sand.u32 %s318, 1
          %s669 = scalar_lea.sflag [#allocation10], %s668
          %s670 = sand.u32 %s318, 1
          %s671 = smul.addr %s670, 32
          %s672 = scalar_lea.vmem [#allocation9], %s671
          %s674 = ssub.s32 512, 512
          %675 = vsyncadd %s669, %s674
          %s676 = smul.addr %s44, 4
          %s677 = smul.addr %s676, 128
          %s678 = scalar_lea.hbm %s10, %s677
          %s679 = sshll.u32 %s672, 4
          %s680 = int_to_ptr.vmem [resolvable:$true] %s679
          %685 = dma.hbm_to_vmem [thread:$0]  %s678, 512, %s680, %s669, 128, 128, 8
        $region60: #{tpu_custom_call.1} parent=15 // pred_fallthru
          _
        // Predicated region
        $region61: #{tpu_custom_call.1} parent=15 // pred_check
          %p686 = pneg %p354
        $region62: #{tpu_custom_call.1} parent=15 // pred_check_branch
          %688 = sbr.rel (%p686) target = $region64
        $region63: #{tpu_custom_call.1} parent=15 // pred_region
          %p689 = scmp.lt.s32.totalorder %s44, 1
          %s690 = scalar_select %p689, %s44, 1
          %s691 = scalar_lea.vmem %s11, %s690
        $region64: #{tpu_custom_call.1} parent=15 // pred_fallthru
          _
        // Predicated region
        $region65: #{tpu_custom_call.1} parent=15 // pred_check
          %p692 = pneg %p380
        $region66: #{tpu_custom_call.1} parent=15 // pred_check_branch
          %694 = sbr.rel (%p692) target = $region68
        $region67: #{tpu_custom_call.1} parent=15 // pred_region
          %p695 = scmp.lt.s32.totalorder %s44, 1
          %s696 = scalar_select %p695, %s44, 1
          %s697 = smul.addr %s696, 8
          %s698 = smul.addr %s697, 8
          %s699 = scalar_lea.vmem %s12, %s698
        $region68: #{tpu_custom_call.1} parent=15 // pred_fallthru
          _
        // Predicated region
        $region69: #{tpu_custom_call.1} parent=15 // pred_check
          %p700 = pneg %p406
        $region70: #{tpu_custom_call.1} parent=15 // pred_check_branch
          %702 = sbr.rel (%p700) target = $region72
        $region71: #{tpu_custom_call.1} parent=15 // pred_region
          %p703 = scmp.lt.s32.totalorder %s44, 1
          %s704 = scalar_select %p703, %s44, 1
          %s705 = scalar_lea.vmem %s13, %s704
        $region72: #{tpu_custom_call.1} parent=15 // pred_fallthru
          _
        // Predicated region
        $region73: #{tpu_custom_call.1} parent=15 // pred_check
          %p706 = pneg %p432
        $region74: #{tpu_custom_call.1} parent=15 // pred_check_branch
          %708 = sbr.rel (%p706) target = $region76
        $region75: #{tpu_custom_call.1} parent=15 // pred_region
          %p709 = scmp.lt.s32.totalorder %s44, 1
          %s710 = scalar_select %p709, %s44, 1
          %s711 = scalar_lea.vmem %s14, %s710
        $region76: #{tpu_custom_call.1} parent=15 // pred_fallthru
          _
        // Predicated region
        $region77: #{tpu_custom_call.1} parent=15 // pred_check
          %p712 = pneg %p458
        $region78: #{tpu_custom_call.1} parent=15 // pred_check_branch
          %714 = sbr.rel (%p712) target = $region80
        $region79: #{tpu_custom_call.1} parent=15 // pred_region
          %p715 = scmp.lt.s32.totalorder %s44, 1
          %s716 = scalar_select %p715, %s44, 1
          %s717 = scalar_lea.vmem %s15, %s716
        $region80: #{tpu_custom_call.1} parent=15 // pred_fallthru
          _
        // Predicated region
        $region81: #{tpu_custom_call.1} parent=15 // pred_check
          %p718 = pneg %p484
        $region82: #{tpu_custom_call.1} parent=15 // pred_check_branch
          %720 = sbr.rel (%p718) target = $region84
        $region83: #{tpu_custom_call.1} parent=15 // pred_region
          %p721 = scmp.lt.s32.totalorder %s44, 1
          %s722 = scalar_select %p721, %s44, 1
          %s723 = scalar_lea.vmem %s16, %s722
        $region84: #{tpu_custom_call.1} parent=15 // pred_fallthru
          _
        // Predicated region
        $region85: #{tpu_custom_call.1} parent=15 // pred_check
          %p724 = pneg %p510
        $region86: #{tpu_custom_call.1} parent=15 // pred_check_branch
          %726 = sbr.rel (%p724) target = $region88
        $region87: #{tpu_custom_call.1} parent=15 // pred_region
          %p727 = scmp.lt.s32.totalorder %s44, 1
          %s728 = scalar_select %p727, %s44, 1
          %s729 = scalar_lea.vmem %s17, %s728
        $region88: #{tpu_custom_call.1} parent=15 // pred_fallthru
          _
      $region16: #{tpu_custom_call.1} parent=5 // pred_fallthru
        _
      %p730 = scmp.le.s32.totalorder 1, %s36
      %p731 = scmp.lt.s32.totalorder %s36, 5
      %p732 = pnand %p730, %p731
      %p733 = pneg %p732
      // Predicated region
      $region89: #{tpu_custom_call.1} parent=5 // pred_check
        _
      $region90: #{tpu_custom_call.1} parent=5 // pred_check_branch
        %735 = sbr.rel (%p732) target = $region92
      $region91: #{tpu_custom_call.1} parent=5 // pred_region
        %s736 = ssub.s32 %s36, 1
        %s737 = sand.u32 %s61, 1
        %s738 = scalar_lea.sflag [#allocation4], %s737
        %s739 = sand.u32 %s61, 1
        %s740 = scalar_lea.vmem [#allocation3], %s739
        // Predicated region
        $region93: #{tpu_custom_call.1} parent=91 // pred_check
          %p741 = pneg %p74
        $region94: #{tpu_custom_call.1} parent=91 // pred_check_branch
          %743 = sbr.rel (%p741) target = $region96
        $region95: #{tpu_custom_call.1} parent=91 // pred_region
          %744 = dma.done %s738, 16
        $region96: #{tpu_custom_call.1} parent=91 // pred_fallthru
          _
        %s745 = sand.u32 %s41, 1
        %s746 = scalar_lea.sflag [#allocation7], %s745
        %s747 = sand.u32 %s87, 1
        %s748 = smul.addr %s747, 8
        %s749 = scalar_lea.vmem [#allocation6], %s748
        // Predicated region
        $region97: #{tpu_custom_call.1} parent=91 // pred_check
          %p750 = pneg %p100
        $region98: #{tpu_custom_call.1} parent=91 // pred_check_branch
          %752 = sbr.rel (%p750) target = $region100
        $region99: #{tpu_custom_call.1} parent=91 // pred_region
          %753 = dma.done %s746, 128
        $region100: #{tpu_custom_call.1} parent=91 // pred_fallthru
          _
        %s754 = sand.u32 %s41, 1
        %s755 = scalar_lea.sflag [#allocation7], %s754
        %s756 = sand.u32 %s269, 1
        %s757 = smul.addr %s756, 32
        %s758 = scalar_lea.vmem [#allocation8], %s757
        // Predicated region
        $region101: #{tpu_custom_call.1} parent=91 // pred_check
          %p759 = pneg %p282
        $region102: #{tpu_custom_call.1} parent=91 // pred_check_branch
          %761 = sbr.rel (%p759) target = $region104
        $region103: #{tpu_custom_call.1} parent=91 // pred_region
          %762 = dma.done %s755, 512
        $region104: #{tpu_custom_call.1} parent=91 // pred_fallthru
          _
        %s763 = sand.u32 %s321, 1
        %s764 = scalar_lea.sflag [#allocation10], %s763
        %s765 = sand.u32 %s321, 1
        %s766 = smul.addr %s765, 32
        %s767 = scalar_lea.vmem [#allocation9], %s766
        // Predicated region
        $region105: #{tpu_custom_call.1} parent=91 // pred_check
          %p768 = pneg %p334
        $region106: #{tpu_custom_call.1} parent=91 // pred_check_branch
          %770 = sbr.rel (%p768) target = $region108
        $region107: #{tpu_custom_call.1} parent=91 // pred_region
          %771 = dma.done %s764, 512
        $region108: #{tpu_custom_call.1} parent=91 // pred_fallthru
          _
        %s772 = sand.u32 %s61, 1
        %s773 = scalar_lea.sflag [#allocation4], %s772
        %s774 = sand.u32 %s61, 1
        %s775 = scalar_lea.vmem [#allocation3], %s774
        %p776 = pneg %p74
        %p777 = pneg %p71
        %s778 = sand.u32 %s41, 1
        %s779 = scalar_lea.sflag [#allocation7], %s778
        %s780 = sand.u32 %s87, 1
        %s781 = smul.addr %s780, 8
        %s782 = scalar_lea.vmem [#allocation6], %s781
        %p783 = pneg %p100
        %p784 = pneg %p97
        %p785 = scmp.lt.s32.totalorder %s46, 1
        %s786 = scalar_select %p785, %s46, 1
        %s787 = smul.addr %s786, 4
        %s788 = smul.addr %s787, 8
        %s789 = scalar_lea.vmem %s2, %s788
        %p790 = pneg %p126
        %p791 = pneg %p123
        %p792 = scmp.lt.s32.totalorder %s46, 1
        %s793 = scalar_select %p792, %s46, 1
        %s794 = scalar_lea.vmem %s3, %s793
        %p795 = pneg %p152
        %p796 = pneg %p149
        %p797 = scmp.lt.s32.totalorder %s46, 1
        %s798 = scalar_select %p797, %s46, 1
        %s799 = smul.addr %s798, 4
        %s800 = smul.addr %s799, 8
        %s801 = scalar_lea.vmem %s4, %s800
        %p802 = pneg %p178
        %p803 = pneg %p175
        %p804 = scmp.lt.s32.totalorder %s46, 1
        %s805 = scalar_select %p804, %s46, 1
        %s806 = scalar_lea.vmem %s5, %s805
        %p807 = pneg %p204
        %p808 = pneg %p201
        %p809 = scmp.lt.s32.totalorder %s46, 1
        %s810 = scalar_select %p809, %s46, 1
        %s811 = smul.addr %s810, 4
        %s812 = smul.addr %s811, 8
        %s813 = scalar_lea.vmem %s6, %s812
        %p814 = pneg %p230
        %p815 = pneg %p227
        %p816 = scmp.lt.s32.totalorder %s46, 1
        %s817 = scalar_select %p816, %s46, 1
        %s818 = scalar_lea.vmem %s7, %s817
        %p819 = pneg %p256
        %p820 = pneg %p253
        %s821 = sand.u32 %s41, 1
        %s822 = scalar_lea.sflag [#allocation7], %s821
        %s823 = sand.u32 %s269, 1
        %s824 = smul.addr %s823, 32
        %s825 = scalar_lea.vmem [#allocation8], %s824
        %p826 = pneg %p282
        %p827 = pneg %p279
        %p828 = scmp.lt.s32.totalorder %s46, 1
        %s829 = scalar_select %p828, %s46, 1
        %s830 = scalar_lea.vmem %s9, %s829
        %p831 = pneg %p308
        %p832 = pneg %p305
        %s833 = sand.u32 %s321, 1
        %s834 = scalar_lea.sflag [#allocation10], %s833
        %s835 = sand.u32 %s321, 1
        %s836 = smul.addr %s835, 32
        %s837 = scalar_lea.vmem [#allocation9], %s836
        %p838 = pneg %p334
        %p839 = pneg %p331
        %p840 = scmp.lt.s32.totalorder %s46, 1
        %s841 = scalar_select %p840, %s46, 1
        %s842 = scalar_lea.vmem %s11, %s841
        %p843 = pneg %p360
        %p844 = pneg %p357
        %p845 = scmp.lt.s32.totalorder %s46, 1
        %s846 = scalar_select %p845, %s46, 1
        %s847 = smul.addr %s846, 8
        %s848 = smul.addr %s847, 8
        %s849 = scalar_lea.vmem %s12, %s848
        %p850 = pneg %p386
        %p851 = pneg %p383
        %p852 = scmp.lt.s32.totalorder %s46, 1
        %s853 = scalar_select %p852, %s46, 1
        %s854 = scalar_lea.vmem %s13, %s853
        %p855 = pneg %p412
        %p856 = pneg %p409
        %p857 = scmp.lt.s32.totalorder %s46, 1
        %s858 = scalar_select %p857, %s46, 1
        %s859 = scalar_lea.vmem %s14, %s858
        %p860 = pneg %p438
        %p861 = pneg %p435
        %p862 = scmp.lt.s32.totalorder %s46, 1
        %s863 = scalar_select %p862, %s46, 1
        %s864 = scalar_lea.vmem %s15, %s863
        %p865 = pneg %p464
        %p866 = pneg %p461
        %p867 = scmp.lt.s32.totalorder %s46, 1
        %s868 = scalar_select %p867, %s46, 1
        %s869 = scalar_lea.vmem %s16, %s868
        %p870 = pneg %p490
        %p871 = pneg %p487
        %p872 = scmp.lt.s32.totalorder %s46, 1
        %s873 = scalar_select %p872, %s46, 1
        %s874 = scalar_lea.vmem %s17, %s873
        %p875 = pneg %p516
        %p876 = pneg %p513
        %p877 = pneg %p542
        %p878 = pneg %p539
        %s879 = sand.u32 %s529, 1
        %s880 = scalar_lea.sflag [#allocation5], %s879
        %s881 = sand.u32 %s529, 1
        %s882 = smul.addr %s881, 8
        %s883 = scalar_lea.vmem [#allocation11], %s882
        %p884 = scmp.lt.s32.totalorder %s46, 1
        %s885 = scalar_select %p884, %s46, 1
        %s886 = smul.addr %s885, 4
        %s887 = smul.addr %s886, 8
        %s888 = scalar_lea.vmem %s2, %s887
        %p889 = scmp.lt.s32.totalorder %s46, 1
        %s890 = scalar_select %p889, %s46, 1
        %s891 = scalar_lea.vmem %s3, %s890
        %p892 = scmp.lt.s32.totalorder %s46, 1
        %s893 = scalar_select %p892, %s46, 1
        %s894 = smul.addr %s893, 4
        %s895 = smul.addr %s894, 8
        %s896 = scalar_lea.vmem %s4, %s895
        %p897 = scmp.lt.s32.totalorder %s46, 1
        %s898 = scalar_select %p897, %s46, 1
        %s899 = scalar_lea.vmem %s5, %s898
        %p900 = scmp.lt.s32.totalorder %s46, 1
        %s901 = scalar_select %p900, %s46, 1
        %s902 = smul.addr %s901, 4
        %s903 = smul.addr %s902, 8
        %s904 = scalar_lea.vmem %s6, %s903
        %p905 = scmp.lt.s32.totalorder %s46, 1
        %s906 = scalar_select %p905, %s46, 1
        %s907 = scalar_lea.vmem %s7, %s906
        %p908 = scmp.lt.s32.totalorder %s46, 1
        %s909 = scalar_select %p908, %s46, 1
        %s910 = scalar_lea.vmem %s9, %s909
        %p911 = scmp.lt.s32.totalorder %s46, 1
        %s912 = scalar_select %p911, %s46, 1
        %s913 = scalar_lea.vmem %s11, %s912
        %p914 = scmp.lt.s32.totalorder %s46, 1
        %s915 = scalar_select %p914, %s46, 1
        %s916 = smul.addr %s915, 8
        %s917 = smul.addr %s916, 8
        %s918 = scalar_lea.vmem %s12, %s917
        %p919 = scmp.lt.s32.totalorder %s46, 1
        %s920 = scalar_select %p919, %s46, 1
        %s921 = scalar_lea.vmem %s13, %s920
        %p922 = scmp.lt.s32.totalorder %s46, 1
        %s923 = scalar_select %p922, %s46, 1
        %s924 = scalar_lea.vmem %s14, %s923
        %p925 = scmp.lt.s32.totalorder %s46, 1
        %s926 = scalar_select %p925, %s46, 1
        %s927 = scalar_lea.vmem %s15, %s926
        %p928 = scmp.lt.s32.totalorder %s46, 1
        %s929 = scalar_select %p928, %s46, 1
        %s930 = scalar_lea.vmem %s16, %s929
        %p931 = scmp.lt.s32.totalorder %s46, 1
        %s932 = scalar_select %p931, %s46, 1
        %s933 = scalar_lea.vmem %s17, %s932
        %p934 = scmp.eq.s32.totalorder %s46, 0
        // Predicated region
        $region109: #{tpu_custom_call.1} parent=91 // pred_check
          %p935 = pneg %p934
        $region110: #{tpu_custom_call.1} parent=91 // pred_check_branch
          %937 = sbr.rel (%p935) target = $region112
        $region111: #{tpu_custom_call.1} parent=91 // pred_region
          %v938 = vld [vmem:[%s749] sm:$0xff]
          %vm939 = vcmask 261120
          %940 = vst.msk [vmem:[#allocation2] sm:$0xff] %vm939, %v938
        $region112: #{tpu_custom_call.1} parent=91 // pred_fallthru
          _
        %v941 = vld [vmem:[#allocation2] sm:$0xff]
        %v942 = vld [vmem:[%s740] sm:$0x1]
        %v943 = vld [vmem:[%s891] sm:$0x1]
        %v944 = vld [vmem:[%s899] sm:$0x1]
        %v945 = vld [vmem:[%s907] sm:$0x1]
        %v946 = vld [vmem:[%s910] sm:$0x1]
        %v947 = vld [vmem:[%s913] sm:$0x1]
        %v948 = vld [vmem:[%s921] sm:$0x1]
        %v949 = vld [vmem:[%s924] sm:$0x1]
        %v950 = vld [vmem:[%s927] sm:$0x1]
        %v951 = vld [vmem:[%s930] sm:$0x1]
        %v952 = vld [vmem:[%s933] sm:$0x1]
        %v953 = vld [vmem:[%s888] sm:$0xff]
        %v954 = vld [vmem:[%s888 + $0x8] sm:$0xff]
        %v955 = vld [vmem:[%s888 + $0x10] sm:$0xff]
        %v956 = vld [vmem:[%s888 + $0x18] sm:$0xff]
        %v958 = vlaneseq
        %v959 = vshrl.u32 %v958, 7
        %v960 = vsub.s32 0, %v959
        %v961 = vrot.slane %v943, %v960
        %vm963 = vcmask 261120
        %v965 = vsel %vm963, %v941, 0
        %967 = vmatprep.subr.mxu0 0.0
        %968 = vmatpush1.msra.mxu0 %v953
        %969 = vmatprep.subr.mxu0 0.0
        %970 = vmatpush1.msra.mxu0 %v954
        %971 = vmatprep.subr.mxu0 0.0
        %972 = vmatpush1.msra.mxu0 %v955
        %973 = vmatprep.subr.mxu0 0.0
        %974 = vmatpush1.msra.mxu0 %v956
        %975 = vmatprep.subr.mxu0 0.0
        %976 = vmatpush1.msra.mxu0 0.0
        %977 = vmatprep.subr.mxu0 0.0
        %978 = vmatpush1.msra.mxu0 0.0
        %979 = vmatprep.subr.mxu0 0.0
        %980 = vmatpush1.msra.mxu0 0.0
        %981 = vmatprep.subr.mxu0 0.0
        %982 = vmatpush1.msra.mxu0 0.0
        %983 = vmatprep.subr.mxu0 0.0
        %984 = vmatpush1.msra.mxu0 0.0
        %985 = vmatprep.subr.mxu0 0.0
        %986 = vmatpush1.msra.mxu0 0.0
        %987 = vmatprep.subr.mxu0 0.0
        %988 = vmatpush1.msra.mxu0 0.0
        %989 = vmatprep.subr.mxu0 0.0
        %990 = vmatpush1.msra.mxu0 0.0
        %991 = vmatprep.subr.mxu0 0.0
        %992 = vmatpush1.msra.mxu0 0.0
        %993 = vmatprep.subr.mxu0 0.0
        %994 = vmatpush1.msra.mxu0 0.0
        %995 = vmatprep.subr.mxu0 0.0
        %996 = vmatpush1.msra.mxu0 0.0
        %997 = vmatprep.subr.mxu0 0.0
        %998 = vmatpush1.msra.mxu0 0.0
        %999 = vmatprep.subr.mxu0 0.0
        %1000 = vmatpush1.msra.mxu0 0.0
        %1001 = vmatprep.subr.mxu0 0.0
        %1002 = vmatpush1.msra.mxu0 0.0
        %1003 = vmatprep.subr.mxu0 0.0
        %1004 = vmatpush1.msra.mxu0 0.0
        %1005 = vmatprep.subr.mxu0 0.0
        %1006 = vmatpush1.msra.mxu0 0.0
        %1007 = vmatprep.subr.mxu0 0.0
        %1008 = vmatpush1.msra.mxu0 0.0
        %1009 = vmatprep.subr.mxu0 0.0
        %1010 = vmatpush1.msra.mxu0 0.0
        %1011 = vmatprep.subr.mxu0 0.0
        %1012 = vmatpush1.msra.mxu0 0.0
        %1013 = vmatprep.subr.mxu0 0.0
        %1014 = vmatpush1.msra.mxu0 0.0
        %1015 = vmatprep.subr.mxu0 0.0
        %1016 = vmatpush1.msra.mxu0 0.0
        %1017 = vmatprep.subr.mxu0 0.0
        %1018 = vmatpush1.msra.mxu0 0.0
        %1019 = vmatprep.subr.mxu0 0.0
        %1020 = vmatpush1.msra.mxu0 0.0
        %1021 = vmatprep.subr.mxu0 0.0
        %1022 = vmatpush1.msra.mxu0 0.0
        %1023 = vmatprep.subr.mxu0 0.0
        %1024 = vmatpush1.msra.mxu0 0.0
        %1025 = vmatprep.subr.mxu0 0.0
        %1026 = vmatpush1.msra.mxu0 0.0
        %1027 = vmatprep.subr.mxu0 0.0
        %1028 = vmatpush1.msra.mxu0 0.0
        %1029 = vmatprep.subr.mxu0 0.0
        %1030 = vmatpush1.msra.mxu0 0.0
        %1031 = vmatprep.mubr.f32.mxu0 0.0
        %1032 = vmatmul.mubr.f32.gmra.mrb[0].mxu0 %v965
        %v1033 = vpop.f32.mrb[0].mxu0
        %v1034 = vadd.f32 %v961, %v1033
        %v1035 = vpop.f32.mrb[0].mxu0
        %1036 = vdwg.mxu0
        %v1037 = vmul.f32 %v1034, 0.35355338
        %v1038 = vld [vmem:[%s896] sm:$0xff]
        %v1039 = vld [vmem:[%s896 + $0x8] sm:$0xff]
        %v1040 = vld [vmem:[%s896 + $0x10] sm:$0xff]
        %v1041 = vld [vmem:[%s896 + $0x18] sm:$0xff]
        %v1043 = vlaneseq
        %v1044 = vshrl.u32 %v1043, 7
        %v1045 = vsub.s32 0, %v1044
        %v1046 = vrot.slane %v944, %v1045
        %1048 = vmatprep.subr.mxu0 0.0
        %1049 = vmatpush1.msra.mxu0 %v1038
        %1050 = vmatprep.subr.mxu0 0.0
        %1051 = vmatpush1.msra.mxu0 %v1039
        %1052 = vmatprep.subr.mxu0 0.0
        %1053 = vmatpush1.msra.mxu0 %v1040
        %1054 = vmatprep.subr.mxu0 0.0
        %1055 = vmatpush1.msra.mxu0 %v1041
        %1056 = vmatprep.subr.mxu0 0.0
        %1057 = vmatpush1.msra.mxu0 0.0
        %1058 = vmatprep.subr.mxu0 0.0
        %1059 = vmatpush1.msra.mxu0 0.0
        %1060 = vmatprep.subr.mxu0 0.0
        %1061 = vmatpush1.msra.mxu0 0.0
        %1062 = vmatprep.subr.mxu0 0.0
        %1063 = vmatpush1.msra.mxu0 0.0
        %1064 = vmatprep.subr.mxu0 0.0
        %1065 = vmatpush1.msra.mxu0 0.0
        %1066 = vmatprep.subr.mxu0 0.0
        %1067 = vmatpush1.msra.mxu0 0.0
        %1068 = vmatprep.subr.mxu0 0.0
        %1069 = vmatpush1.msra.mxu0 0.0
        %1070 = vmatprep.subr.mxu0 0.0
        %1071 = vmatpush1.msra.mxu0 0.0
        %1072 = vmatprep.subr.mxu0 0.0
        %1073 = vmatpush1.msra.mxu0 0.0
        %1074 = vmatprep.subr.mxu0 0.0
        %1075 = vmatpush1.msra.mxu0 0.0
        %1076 = vmatprep.subr.mxu0 0.0
        %1077 = vmatpush1.msra.mxu0 0.0
        %1078 = vmatprep.subr.mxu0 0.0
        %1079 = vmatpush1.msra.mxu0 0.0
        %1080 = vmatprep.subr.mxu0 0.0
        %1081 = vmatpush1.msra.mxu0 0.0
        %1082 = vmatprep.subr.mxu0 0.0
        %1083 = vmatpush1.msra.mxu0 0.0
        %1084 = vmatprep.subr.mxu0 0.0
        %1085 = vmatpush1.msra.mxu0 0.0
        %1086 = vmatprep.subr.mxu0 0.0
        %1087 = vmatpush1.msra.mxu0 0.0
        %1088 = vmatprep.subr.mxu0 0.0
        %1089 = vmatpush1.msra.mxu0 0.0
        %1090 = vmatprep.subr.mxu0 0.0
        %1091 = vmatpush1.msra.mxu0 0.0
        %1092 = vmatprep.subr.mxu0 0.0
        %1093 = vmatpush1.msra.mxu0 0.0
        %1094 = vmatprep.subr.mxu0 0.0
        %1095 = vmatpush1.msra.mxu0 0.0
        %1096 = vmatprep.subr.mxu0 0.0
        %1097 = vmatpush1.msra.mxu0 0.0
        %1098 = vmatprep.subr.mxu0 0.0
        %1099 = vmatpush1.msra.mxu0 0.0
        %1100 = vmatprep.subr.mxu0 0.0
        %1101 = vmatpush1.msra.mxu0 0.0
        %1102 = vmatprep.subr.mxu0 0.0
        %1103 = vmatpush1.msra.mxu0 0.0
        %1104 = vmatprep.subr.mxu0 0.0
        %1105 = vmatpush1.msra.mxu0 0.0
        %1106 = vmatprep.subr.mxu0 0.0
        %1107 = vmatpush1.msra.mxu0 0.0
        %1108 = vmatprep.subr.mxu0 0.0
        %1109 = vmatpush1.msra.mxu0 0.0
        %1110 = vmatprep.subr.mxu0 0.0
        %1111 = vmatpush1.msra.mxu0 0.0
        %1112 = vmatprep.mubr.f32.mxu0 0.0
        %1113 = vmatmul.mubr.f32.gmra.mrb[0].mxu0 %v965
        %v1114 = vpop.f32.mrb[0].mxu0
        %v1115 = vadd.f32 %v1046, %v1114
        %v1116 = vpop.f32.mrb[0].mxu0
        %1117 = vdwg.mxu0
        %v1118 = vld [vmem:[%s904] sm:$0xff]
        %v1119 = vld [vmem:[%s904 + $0x8] sm:$0xff]
        %v1120 = vld [vmem:[%s904 + $0x10] sm:$0xff]
        %v1121 = vld [vmem:[%s904 + $0x18] sm:$0xff]
        %v1123 = vlaneseq
        %v1124 = vshrl.u32 %v1123, 7
        %v1125 = vsub.s32 0, %v1124
        %v1126 = vrot.slane %v945, %v1125
        %1128 = vmatprep.subr.mxu0 0.0
        %1129 = vmatpush1.msra.mxu0 %v1118
        %1130 = vmatprep.subr.mxu0 0.0
        %1131 = vmatpush1.msra.mxu0 %v1119
        %1132 = vmatprep.subr.mxu0 0.0
        %1133 = vmatpush1.msra.mxu0 %v1120
        %1134 = vmatprep.subr.mxu0 0.0
        %1135 = vmatpush1.msra.mxu0 %v1121
        %1136 = vmatprep.subr.mxu0 0.0
        %1137 = vmatpush1.msra.mxu0 0.0
        %1138 = vmatprep.subr.mxu0 0.0
        %1139 = vmatpush1.msra.mxu0 0.0
        %1140 = vmatprep.subr.mxu0 0.0
        %1141 = vmatpush1.msra.mxu0 0.0
        %1142 = vmatprep.subr.mxu0 0.0
        %1143 = vmatpush1.msra.mxu0 0.0
        %1144 = vmatprep.subr.mxu0 0.0
        %1145 = vmatpush1.msra.mxu0 0.0
        %1146 = vmatprep.subr.mxu0 0.0
        %1147 = vmatpush1.msra.mxu0 0.0
        %1148 = vmatprep.subr.mxu0 0.0
        %1149 = vmatpush1.msra.mxu0 0.0
        %1150 = vmatprep.subr.mxu0 0.0
        %1151 = vmatpush1.msra.mxu0 0.0
        %1152 = vmatprep.subr.mxu0 0.0
        %1153 = vmatpush1.msra.mxu0 0.0
        %1154 = vmatprep.subr.mxu0 0.0
        %1155 = vmatpush1.msra.mxu0 0.0
        %1156 = vmatprep.subr.mxu0 0.0
        %1157 = vmatpush1.msra.mxu0 0.0
        %1158 = vmatprep.subr.mxu0 0.0
        %1159 = vmatpush1.msra.mxu0 0.0
        %1160 = vmatprep.subr.mxu0 0.0
        %1161 = vmatpush1.msra.mxu0 0.0
        %1162 = vmatprep.subr.mxu0 0.0
        %1163 = vmatpush1.msra.mxu0 0.0
        %1164 = vmatprep.subr.mxu0 0.0
        %1165 = vmatpush1.msra.mxu0 0.0
        %1166 = vmatprep.subr.mxu0 0.0
        %1167 = vmatpush1.msra.mxu0 0.0
        %1168 = vmatprep.subr.mxu0 0.0
        %1169 = vmatpush1.msra.mxu0 0.0
        %1170 = vmatprep.subr.mxu0 0.0
        %1171 = vmatpush1.msra.mxu0 0.0
        %1172 = vmatprep.subr.mxu0 0.0
        %1173 = vmatpush1.msra.mxu0 0.0
        %1174 = vmatprep.subr.mxu0 0.0
        %1175 = vmatpush1.msra.mxu0 0.0
        %1176 = vmatprep.subr.mxu0 0.0
        %1177 = vmatpush1.msra.mxu0 0.0
        %1178 = vmatprep.subr.mxu0 0.0
        %1179 = vmatpush1.msra.mxu0 0.0
        %1180 = vmatprep.subr.mxu0 0.0
        %1181 = vmatpush1.msra.mxu0 0.0
        %1182 = vmatprep.subr.mxu0 0.0
        %1183 = vmatpush1.msra.mxu0 0.0
        %1184 = vmatprep.subr.mxu0 0.0
        %1185 = vmatpush1.msra.mxu0 0.0
        %1186 = vmatprep.subr.mxu0 0.0
        %1187 = vmatpush1.msra.mxu0 0.0
        %1188 = vmatprep.subr.mxu0 0.0
        %1189 = vmatpush1.msra.mxu0 0.0
        %1190 = vmatprep.subr.mxu0 0.0
        %1191 = vmatpush1.msra.mxu0 0.0
        %1192 = vmatprep.mubr.f32.mxu0 0.0
        %1193 = vmatmul.mubr.f32.gmra.mrb[0].mxu0 %v965
        %v1194 = vpop.f32.mrb[0].mxu0
        %v1195 = vadd.f32 %v1126, %v1194
        %v1196 = vpop.f32.mrb[0].mxu0
        %1197 = vdwg.mxu0
        %v1199 = vlaneseq
        %v1200 = vshrl.u32 %v1199, 7
        %v1201 = vsub.s32 0, %v1200
        %v1202 = vrot.slane %v946, %v1201
        %v1205 = vlaneseq
        %v1206 = vshrl.u32 %v1205, 7
        %v1207 = vsub.s32 0, %v1206
        %v1208 = vrot.slane %v942, %v1207
        %vm1210 = vcmask 64512
        %v1212 = vsel %vm1210, %v1037, 0
        %v1215 = vsel %vm1210, %v1115, 0
        %1217 = vmatprep.subr.mxu0 0.0
        %1218 = vmatpush1.xpose.msra.mxu0 %v1215
        %1219 = vmatprep.subr.mxu0 0.0
        %1220 = vmatpush1.xpose.msra.mxu0 0.0
        %1221 = vmatprep.subr.mxu0 0.0
        %1222 = vmatpush1.xpose.msra.mxu0 0.0
        %1223 = vmatprep.subr.mxu0 0.0
        %1224 = vmatpush1.xpose.msra.mxu0 0.0
        %1225 = vmatprep.subr.mxu0 0.0
        %1226 = vmatpush1.xpose.msra.mxu0 0.0
        %1227 = vmatprep.subr.mxu0 0.0
        %1228 = vmatpush1.xpose.msra.mxu0 0.0
        %1229 = vmatprep.subr.mxu0 0.0
        %1230 = vmatpush1.xpose.msra.mxu0 0.0
        %1231 = vmatprep.subr.mxu0 0.0
        %1232 = vmatpush1.xpose.msra.mxu0 0.0
        %1233 = vmatprep.subr.mxu0 0.0
        %1234 = vmatpush1.xpose.msra.mxu0 0.0
        %1235 = vmatprep.subr.mxu0 0.0
        %1236 = vmatpush1.xpose.msra.mxu0 0.0
        %1237 = vmatprep.subr.mxu0 0.0
        %1238 = vmatpush1.xpose.msra.mxu0 0.0
        %1239 = vmatprep.subr.mxu0 0.0
        %1240 = vmatpush1.xpose.msra.mxu0 0.0
        %1241 = vmatprep.subr.mxu0 0.0
        %1242 = vmatpush1.xpose.msra.mxu0 0.0
        %1243 = vmatprep.subr.mxu0 0.0
        %1244 = vmatpush1.xpose.msra.mxu0 0.0
        %1245 = vmatprep.subr.mxu0 0.0
        %1246 = vmatpush1.xpose.msra.mxu0 0.0
        %1247 = vmatprep.subr.mxu0 0.0
        %1248 = vmatpush1.xpose.msra.mxu0 0.0
        %1249 = vmatprep.subr.mxu0 0.0
        %1250 = vmatpush1.xpose.msra.mxu0 0.0
        %1251 = vmatprep.subr.mxu0 0.0
        %1252 = vmatpush1.xpose.msra.mxu0 0.0
        %1253 = vmatprep.subr.mxu0 0.0
        %1254 = vmatpush1.xpose.msra.mxu0 0.0
        %1255 = vmatprep.subr.mxu0 0.0
        %1256 = vmatpush1.xpose.msra.mxu0 0.0
        %1257 = vmatprep.subr.mxu0 0.0
        %1258 = vmatpush1.xpose.msra.mxu0 0.0
        %1259 = vmatprep.subr.mxu0 0.0
        %1260 = vmatpush1.xpose.msra.mxu0 0.0
        %1261 = vmatprep.subr.mxu0 0.0
        %1262 = vmatpush1.xpose.msra.mxu0 0.0
        %1263 = vmatprep.subr.mxu0 0.0
        %1264 = vmatpush1.xpose.msra.mxu0 0.0
        %1265 = vmatprep.subr.mxu0 0.0
        %1266 = vmatpush1.xpose.msra.mxu0 0.0
        %1267 = vmatprep.subr.mxu0 0.0
        %1268 = vmatpush1.xpose.msra.mxu0 0.0
        %1269 = vmatprep.subr.mxu0 0.0
        %1270 = vmatpush1.xpose.msra.mxu0 0.0
        %1271 = vmatprep.subr.mxu0 0.0
        %1272 = vmatpush1.xpose.msra.mxu0 0.0
        %1273 = vmatprep.subr.mxu0 0.0
        %1274 = vmatpush1.xpose.msra.mxu0 0.0
        %1275 = vmatprep.subr.mxu0 0.0
        %1276 = vmatpush1.xpose.msra.mxu0 0.0
        %1277 = vmatprep.subr.mxu0 0.0
        %1278 = vmatpush1.xpose.msra.mxu0 0.0
        %1279 = vmatprep.subr.mxu0 0.0
        %1280 = vmatpush1.xpose.msra.mxu0 0.0
        %1281 = vmatprep.mubr.f32.mxu0 0.0
        %1282 = vmatmul.mubr.f32.gmra.mrb[0].mxu0 %v1212
        %v1283 = vpop.f32.mrb[0].mxu0
        %v1284 = vadd.f32 %v1208, %v1283
        %v1285 = vpop.f32.mrb[0].mxu0
        %1286 = vdwg.mxu0
        %v1287 = vsel %vm1210, %v1284, -inf
        %1288 = vmax.xlane.f32.xlu0 %v1287
        %v1289 = vpop.xlane.xlu0 %1288
        %v1290 = vsub.f32 %v1284, %v1289
        %v1291 = vmul.f32 %v1290, 1.442695
        %v1292 = vpow.pop %v1291
        %v1293 = vsel %vm1210, %v1292, 0.0
        %1294 = vadd.xlane.f32.xlu0 %v1293
        %v1295 = vpop.xlane.xlu0 %1294
        %v1296 = vrcp.pop %v1295
        %v1297 = vmul.f32 %v1292, %v1296
        %v1299 = vsel %vm1210, %v1297, 0
        %1301 = vmatprep.subr.mxu0 0.0
        %1302 = vmatpush1.msra.mxu0 %v1195
        %1303 = vmatprep.subr.mxu0 0.0
        %1304 = vmatpush1.msra.mxu0 0.0
        %1305 = vmatprep.subr.mxu0 0.0
        %1306 = vmatpush1.msra.mxu0 0.0
        %1307 = vmatprep.subr.mxu0 0.0
        %1308 = vmatpush1.msra.mxu0 0.0
        %1309 = vmatprep.subr.mxu0 0.0
        %1310 = vmatpush1.msra.mxu0 0.0
        %1311 = vmatprep.subr.mxu0 0.0
        %1312 = vmatpush1.msra.mxu0 0.0
        %1313 = vmatprep.subr.mxu0 0.0
        %1314 = vmatpush1.msra.mxu0 0.0
        %1315 = vmatprep.subr.mxu0 0.0
        %1316 = vmatpush1.msra.mxu0 0.0
        %1317 = vmatprep.subr.mxu0 0.0
        %1318 = vmatpush1.msra.mxu0 0.0
        %1319 = vmatprep.subr.mxu0 0.0
        %1320 = vmatpush1.msra.mxu0 0.0
        %1321 = vmatprep.subr.mxu0 0.0
        %1322 = vmatpush1.msra.mxu0 0.0
        %1323 = vmatprep.subr.mxu0 0.0
        %1324 = vmatpush1.msra.mxu0 0.0
        %1325 = vmatprep.subr.mxu0 0.0
        %1326 = vmatpush1.msra.mxu0 0.0
        %1327 = vmatprep.subr.mxu0 0.0
        %1328 = vmatpush1.msra.mxu0 0.0
        %1329 = vmatprep.subr.mxu0 0.0
        %1330 = vmatpush1.msra.mxu0 0.0
        %1331 = vmatprep.subr.mxu0 0.0
        %1332 = vmatpush1.msra.mxu0 0.0
        %1333 = vmatprep.subr.mxu0 0.0
        %1334 = vmatpush1.msra.mxu0 0.0
        %1335 = vmatprep.subr.mxu0 0.0
        %1336 = vmatpush1.msra.mxu0 0.0
        %1337 = vmatprep.subr.mxu0 0.0
        %1338 = vmatpush1.msra.mxu0 0.0
        %1339 = vmatprep.subr.mxu0 0.0
        %1340 = vmatpush1.msra.mxu0 0.0
        %1341 = vmatprep.subr.mxu0 0.0
        %1342 = vmatpush1.msra.mxu0 0.0
        %1343 = vmatprep.subr.mxu0 0.0
        %1344 = vmatpush1.msra.mxu0 0.0
        %1345 = vmatprep.subr.mxu0 0.0
        %1346 = vmatpush1.msra.mxu0 0.0
        %1347 = vmatprep.subr.mxu0 0.0
        %1348 = vmatpush1.msra.mxu0 0.0
        %1349 = vmatprep.subr.mxu0 0.0
        %1350 = vmatpush1.msra.mxu0 0.0
        %1351 = vmatprep.subr.mxu0 0.0
        %1352 = vmatpush1.msra.mxu0 0.0
        %1353 = vmatprep.subr.mxu0 0.0
        %1354 = vmatpush1.msra.mxu0 0.0
        %1355 = vmatprep.subr.mxu0 0.0
        %1356 = vmatpush1.msra.mxu0 0.0
        %1357 = vmatprep.subr.mxu0 0.0
        %1358 = vmatpush1.msra.mxu0 0.0
        %1359 = vmatprep.subr.mxu0 0.0
        %1360 = vmatpush1.msra.mxu0 0.0
        %1361 = vmatprep.subr.mxu0 0.0
        %1362 = vmatpush1.msra.mxu0 0.0
        %1363 = vmatprep.subr.mxu0 0.0
        %1364 = vmatpush1.msra.mxu0 0.0
        %1365 = vmatprep.mubr.f32.mxu0 0.0
        %1366 = vmatmul.mubr.f32.gmra.mrb[0].mxu0 %v1299
        %v1367 = vpop.f32.mrb[0].mxu0
        %v1368 = vadd.f32 0.0, %v1367
        %v1369 = vpop.f32.mrb[0].mxu0
        %1370 = vdwg.mxu0
        %v1371 = vld [vmem:[%s758] sm:$0xff]
        %v1373 = vsel %vm1210, %v1368, 0
        %1375 = vmatprep.subr.mxu0 0.0
        %1376 = vmatpush1.msra.mxu0 %v1371
        %1377 = vmatprep.subr.mxu0 0.0
        %1378 = vmatpush1.msra.mxu0 0.0
        %1379 = vmatprep.subr.mxu0 0.0
        %1380 = vmatpush1.msra.mxu0 0.0
        %1381 = vmatprep.subr.mxu0 0.0
        %1382 = vmatpush1.msra.mxu0 0.0
        %1383 = vmatprep.subr.mxu0 0.0
        %1384 = vmatpush1.msra.mxu0 0.0
        %1385 = vmatprep.subr.mxu0 0.0
        %1386 = vmatpush1.msra.mxu0 0.0
        %1387 = vmatprep.subr.mxu0 0.0
        %1388 = vmatpush1.msra.mxu0 0.0
        %1389 = vmatprep.subr.mxu0 0.0
        %1390 = vmatpush1.msra.mxu0 0.0
        %1391 = vmatprep.subr.mxu0 0.0
        %1392 = vmatpush1.msra.mxu0 0.0
        %1393 = vmatprep.subr.mxu0 0.0
        %1394 = vmatpush1.msra.mxu0 0.0
        %1395 = vmatprep.subr.mxu0 0.0
        %1396 = vmatpush1.msra.mxu0 0.0
        %1397 = vmatprep.subr.mxu0 0.0
        %1398 = vmatpush1.msra.mxu0 0.0
        %1399 = vmatprep.subr.mxu0 0.0
        %1400 = vmatpush1.msra.mxu0 0.0
        %1401 = vmatprep.subr.mxu0 0.0
        %1402 = vmatpush1.msra.mxu0 0.0
        %1403 = vmatprep.subr.mxu0 0.0
        %1404 = vmatpush1.msra.mxu0 0.0
        %1405 = vmatprep.subr.mxu0 0.0
        %1406 = vmatpush1.msra.mxu0 0.0
        %1407 = vmatprep.subr.mxu0 0.0
        %1408 = vmatpush1.msra.mxu0 0.0
        %1409 = vmatprep.subr.mxu0 0.0
        %1410 = vmatpush1.msra.mxu0 0.0
        %1411 = vmatprep.subr.mxu0 0.0
        %1412 = vmatpush1.msra.mxu0 0.0
        %1413 = vmatprep.subr.mxu0 0.0
        %1414 = vmatpush1.msra.mxu0 0.0
        %1415 = vmatprep.subr.mxu0 0.0
        %1416 = vmatpush1.msra.mxu0 0.0
        %1417 = vmatprep.subr.mxu0 0.0
        %1418 = vmatpush1.msra.mxu0 0.0
        %1419 = vmatprep.subr.mxu0 0.0
        %1420 = vmatpush1.msra.mxu0 0.0
        %1421 = vmatprep.subr.mxu0 0.0
        %1422 = vmatpush1.msra.mxu0 0.0
        %1423 = vmatprep.subr.mxu0 0.0
        %1424 = vmatpush1.msra.mxu0 0.0
        %1425 = vmatprep.subr.mxu0 0.0
        %1426 = vmatpush1.msra.mxu0 0.0
        %1427 = vmatprep.subr.mxu0 0.0
        %1428 = vmatpush1.msra.mxu0 0.0
        %1429 = vmatprep.subr.mxu0 0.0
        %1430 = vmatpush1.msra.mxu0 0.0
        %1431 = vmatprep.subr.mxu0 0.0
        %1432 = vmatpush1.msra.mxu0 0.0
        %1433 = vmatprep.subr.mxu0 0.0
        %1434 = vmatpush1.msra.mxu0 0.0
        %1435 = vmatprep.subr.mxu0 0.0
        %1436 = vmatpush1.msra.mxu0 0.0
        %1437 = vmatprep.subr.mxu0 0.0
        %1438 = vmatpush1.msra.mxu0 0.0
        %1439 = vmatprep.mubr.f32.mxu0 0.0
        %1440 = vmatmul.mubr.f32.gmra.mrb[0].mxu0 %v1373
        %v1441 = vpop.f32.mrb[0].mxu0
        %v1442 = vadd.f32 0.0, %v1441
        %v1443 = vpop.f32.mrb[0].mxu0
        %1444 = vdwg.mxu0
        %v1445 = vadd.f32 %v1202, %v1442
        %1446 = vrot.lane.b32.xlu0 %v1037, 120
        %v1447 = vpop.permute.xlu0 %1446
        %1448 = vrot.lane.b32.xlu0 %v1115, 120
        %v1449 = vpop.permute.xlu0 %1448
        %v1450 = vsel %vm1210, %v1447, 0
        %v1452 = vsel %vm1210, %v1449, 0
        %1454 = vmatprep.subr.mxu0 0.0
        %1455 = vmatpush1.xpose.msra.mxu0 %v1452
        %1456 = vmatprep.subr.mxu0 0.0
        %1457 = vmatpush1.xpose.msra.mxu0 0.0
        %1458 = vmatprep.subr.mxu0 0.0
        %1459 = vmatpush1.xpose.msra.mxu0 0.0
        %1460 = vmatprep.subr.mxu0 0.0
        %1461 = vmatpush1.xpose.msra.mxu0 0.0
        %1462 = vmatprep.subr.mxu0 0.0
        %1463 = vmatpush1.xpose.msra.mxu0 0.0
        %1464 = vmatprep.subr.mxu0 0.0
        %1465 = vmatpush1.xpose.msra.mxu0 0.0
        %1466 = vmatprep.subr.mxu0 0.0
        %1467 = vmatpush1.xpose.msra.mxu0 0.0
        %1468 = vmatprep.subr.mxu0 0.0
        %1469 = vmatpush1.xpose.msra.mxu0 0.0
        %1470 = vmatprep.subr.mxu0 0.0
        %1471 = vmatpush1.xpose.msra.mxu0 0.0
        %1472 = vmatprep.subr.mxu0 0.0
        %1473 = vmatpush1.xpose.msra.mxu0 0.0
        %1474 = vmatprep.subr.mxu0 0.0
        %1475 = vmatpush1.xpose.msra.mxu0 0.0
        %1476 = vmatprep.subr.mxu0 0.0
        %1477 = vmatpush1.xpose.msra.mxu0 0.0
        %1478 = vmatprep.subr.mxu0 0.0
        %1479 = vmatpush1.xpose.msra.mxu0 0.0
        %1480 = vmatprep.subr.mxu0 0.0
        %1481 = vmatpush1.xpose.msra.mxu0 0.0
        %1482 = vmatprep.subr.mxu0 0.0
        %1483 = vmatpush1.xpose.msra.mxu0 0.0
        %1484 = vmatprep.subr.mxu0 0.0
        %1485 = vmatpush1.xpose.msra.mxu0 0.0
        %1486 = vmatprep.subr.mxu0 0.0
        %1487 = vmatpush1.xpose.msra.mxu0 0.0
        %1488 = vmatprep.subr.mxu0 0.0
        %1489 = vmatpush1.xpose.msra.mxu0 0.0
        %1490 = vmatprep.subr.mxu0 0.0
        %1491 = vmatpush1.xpose.msra.mxu0 0.0
        %1492 = vmatprep.subr.mxu0 0.0
        %1493 = vmatpush1.xpose.msra.mxu0 0.0
        %1494 = vmatprep.subr.mxu0 0.0
        %1495 = vmatpush1.xpose.msra.mxu0 0.0
        %1496 = vmatprep.subr.mxu0 0.0
        %1497 = vmatpush1.xpose.msra.mxu0 0.0
        %1498 = vmatprep.subr.mxu0 0.0
        %1499 = vmatpush1.xpose.msra.mxu0 0.0
        %1500 = vmatprep.subr.mxu0 0.0
        %1501 = vmatpush1.xpose.msra.mxu0 0.0
        %1502 = vmatprep.subr.mxu0 0.0
        %1503 = vmatpush1.xpose.msra.mxu0 0.0
        %1504 = vmatprep.subr.mxu0 0.0
        %1505 = vmatpush1.xpose.msra.mxu0 0.0
        %1506 = vmatprep.subr.mxu0 0.0
        %1507 = vmatpush1.xpose.msra.mxu0 0.0
        %1508 = vmatprep.subr.mxu0 0.0
        %1509 = vmatpush1.xpose.msra.mxu0 0.0
        %1510 = vmatprep.subr.mxu0 0.0
        %1511 = vmatpush1.xpose.msra.mxu0 0.0
        %1512 = vmatprep.subr.mxu0 0.0
        %1513 = vmatpush1.xpose.msra.mxu0 0.0
        %1514 = vmatprep.subr.mxu0 0.0
        %1515 = vmatpush1.xpose.msra.mxu0 0.0
        %1516 = vmatprep.subr.mxu0 0.0
        %1517 = vmatpush1.xpose.msra.mxu0 0.0
        %1518 = vmatprep.mubr.f32.mxu0 0.0
        %1519 = vmatmul.mubr.f32.gmra.mrb[0].mxu0 %v1450
        %v1520 = vpop.f32.mrb[0].mxu0
        %v1521 = vadd.f32 %v1208, %v1520
        %v1522 = vpop.f32.mrb[0].mxu0
        %1523 = vdwg.mxu0
        %v1524 = vsel %vm1210, %v1521, -inf
        %1525 = vmax.xlane.f32.xlu0 %v1524
        %v1526 = vpop.xlane.xlu0 %1525
        %v1527 = vsub.f32 %v1521, %v1526
        %v1528 = vmul.f32 %v1527, 1.442695
        %v1529 = vpow.pop %v1528
        %v1530 = vsel %vm1210, %v1529, 0.0
        %1531 = vadd.xlane.f32.xlu0 %v1530
        %v1532 = vpop.xlane.xlu0 %1531
        %v1533 = vrcp.pop %v1532
        %v1534 = vmul.f32 %v1529, %v1533
        %1536 = vrot.lane.b32.xlu0 %v1195, 120
        %v1537 = vpop.permute.xlu0 %1536
        %v1540 = vsel %vm1210, %v1534, 0
        %1542 = vmatprep.subr.mxu0 0.0
        %1543 = vmatpush1.msra.mxu0 %v1537
        %1544 = vmatprep.subr.mxu0 0.0
        %1545 = vmatpush1.msra.mxu0 0.0
        %1546 = vmatprep.subr.mxu0 0.0
        %1547 = vmatpush1.msra.mxu0 0.0
        %1548 = vmatprep.subr.mxu0 0.0
        %1549 = vmatpush1.msra.mxu0 0.0
        %1550 = vmatprep.subr.mxu0 0.0
        %1551 = vmatpush1.msra.mxu0 0.0
        %1552 = vmatprep.subr.mxu0 0.0
        %1553 = vmatpush1.msra.mxu0 0.0
        %1554 = vmatprep.subr.mxu0 0.0
        %1555 = vmatpush1.msra.mxu0 0.0
        %1556 = vmatprep.subr.mxu0 0.0
        %1557 = vmatpush1.msra.mxu0 0.0
        %1558 = vmatprep.subr.mxu0 0.0
        %1559 = vmatpush1.msra.mxu0 0.0
        %1560 = vmatprep.subr.mxu0 0.0
        %1561 = vmatpush1.msra.mxu0 0.0
        %1562 = vmatprep.subr.mxu0 0.0
        %1563 = vmatpush1.msra.mxu0 0.0
        %1564 = vmatprep.subr.mxu0 0.0
        %1565 = vmatpush1.msra.mxu0 0.0
        %1566 = vmatprep.subr.mxu0 0.0
        %1567 = vmatpush1.msra.mxu0 0.0
        %1568 = vmatprep.subr.mxu0 0.0
        %1569 = vmatpush1.msra.mxu0 0.0
        %1570 = vmatprep.subr.mxu0 0.0
        %1571 = vmatpush1.msra.mxu0 0.0
        %1572 = vmatprep.subr.mxu0 0.0
        %1573 = vmatpush1.msra.mxu0 0.0
        %1574 = vmatprep.subr.mxu0 0.0
        %1575 = vmatpush1.msra.mxu0 0.0
        %1576 = vmatprep.subr.mxu0 0.0
        %1577 = vmatpush1.msra.mxu0 0.0
        %1578 = vmatprep.subr.mxu0 0.0
        %1579 = vmatpush1.msra.mxu0 0.0
        %1580 = vmatprep.subr.mxu0 0.0
        %1581 = vmatpush1.msra.mxu0 0.0
        %1582 = vmatprep.subr.mxu0 0.0
        %1583 = vmatpush1.msra.mxu0 0.0
        %1584 = vmatprep.subr.mxu0 0.0
        %1585 = vmatpush1.msra.mxu0 0.0
        %1586 = vmatprep.subr.mxu0 0.0
        %1587 = vmatpush1.msra.mxu0 0.0
        %1588 = vmatprep.subr.mxu0 0.0
        %1589 = vmatpush1.msra.mxu0 0.0
        %1590 = vmatprep.subr.mxu0 0.0
        %1591 = vmatpush1.msra.mxu0 0.0
        %1592 = vmatprep.subr.mxu0 0.0
        %1593 = vmatpush1.msra.mxu0 0.0
        %1594 = vmatprep.subr.mxu0 0.0
        %1595 = vmatpush1.msra.mxu0 0.0
        %1596 = vmatprep.subr.mxu0 0.0
        %1597 = vmatpush1.msra.mxu0 0.0
        %1598 = vmatprep.subr.mxu0 0.0
        %1599 = vmatpush1.msra.mxu0 0.0
        %1600 = vmatprep.subr.mxu0 0.0
        %1601 = vmatpush1.msra.mxu0 0.0
        %1602 = vmatprep.subr.mxu0 0.0
        %1603 = vmatpush1.msra.mxu0 0.0
        %1604 = vmatprep.subr.mxu0 0.0
        %1605 = vmatpush1.msra.mxu0 0.0
        %1606 = vmatprep.mubr.f32.mxu0 0.0
        %1607 = vmatmul.mubr.f32.gmra.mrb[0].mxu0 %v1540
        %v1608 = vpop.f32.mrb[0].mxu0
        %v1609 = vadd.f32 0.0, %v1608
        %v1610 = vpop.f32.mrb[0].mxu0
        %1611 = vdwg.mxu0
        %v1612 = vld [vmem:[%s758 + $0x8] sm:$0xff]
        %v1614 = vsel %vm1210, %v1609, 0
        %1616 = vmatprep.subr.mxu0 0.0
        %1617 = vmatpush1.msra.mxu0 %v1612
        %1618 = vmatprep.subr.mxu0 0.0
        %1619 = vmatpush1.msra.mxu0 0.0
        %1620 = vmatprep.subr.mxu0 0.0
        %1621 = vmatpush1.msra.mxu0 0.0
        %1622 = vmatprep.subr.mxu0 0.0
        %1623 = vmatpush1.msra.mxu0 0.0
        %1624 = vmatprep.subr.mxu0 0.0
        %1625 = vmatpush1.msra.mxu0 0.0
        %1626 = vmatprep.subr.mxu0 0.0
        %1627 = vmatpush1.msra.mxu0 0.0
        %1628 = vmatprep.subr.mxu0 0.0
        %1629 = vmatpush1.msra.mxu0 0.0
        %1630 = vmatprep.subr.mxu0 0.0
        %1631 = vmatpush1.msra.mxu0 0.0
        %1632 = vmatprep.subr.mxu0 0.0
        %1633 = vmatpush1.msra.mxu0 0.0
        %1634 = vmatprep.subr.mxu0 0.0
        %1635 = vmatpush1.msra.mxu0 0.0
        %1636 = vmatprep.subr.mxu0 0.0
        %1637 = vmatpush1.msra.mxu0 0.0
        %1638 = vmatprep.subr.mxu0 0.0
        %1639 = vmatpush1.msra.mxu0 0.0
        %1640 = vmatprep.subr.mxu0 0.0
        %1641 = vmatpush1.msra.mxu0 0.0
        %1642 = vmatprep.subr.mxu0 0.0
        %1643 = vmatpush1.msra.mxu0 0.0
        %1644 = vmatprep.subr.mxu0 0.0
        %1645 = vmatpush1.msra.mxu0 0.0
        %1646 = vmatprep.subr.mxu0 0.0
        %1647 = vmatpush1.msra.mxu0 0.0
        %1648 = vmatprep.subr.mxu0 0.0
        %1649 = vmatpush1.msra.mxu0 0.0
        %1650 = vmatprep.subr.mxu0 0.0
        %1651 = vmatpush1.msra.mxu0 0.0
        %1652 = vmatprep.subr.mxu0 0.0
        %1653 = vmatpush1.msra.mxu0 0.0
        %1654 = vmatprep.subr.mxu0 0.0
        %1655 = vmatpush1.msra.mxu0 0.0
        %1656 = vmatprep.subr.mxu0 0.0
        %1657 = vmatpush1.msra.mxu0 0.0
        %1658 = vmatprep.subr.mxu0 0.0
        %1659 = vmatpush1.msra.mxu0 0.0
        %1660 = vmatprep.subr.mxu0 0.0
        %1661 = vmatpush1.msra.mxu0 0.0
        %1662 = vmatprep.subr.mxu0 0.0
        %1663 = vmatpush1.msra.mxu0 0.0
        %1664 = vmatprep.subr.mxu0 0.0
        %1665 = vmatpush1.msra.mxu0 0.0
        %1666 = vmatprep.subr.mxu0 0.0
        %1667 = vmatpush1.msra.mxu0 0.0
        %1668 = vmatprep.subr.mxu0 0.0
        %1669 = vmatpush1.msra.mxu0 0.0
        %1670 = vmatprep.subr.mxu0 0.0
        %1671 = vmatpush1.msra.mxu0 0.0
        %1672 = vmatprep.subr.mxu0 0.0
        %1673 = vmatpush1.msra.mxu0 0.0
        %1674 = vmatprep.subr.mxu0 0.0
        %1675 = vmatpush1.msra.mxu0 0.0
        %1676 = vmatprep.subr.mxu0 0.0
        %1677 = vmatpush1.msra.mxu0 0.0
        %1678 = vmatprep.subr.mxu0 0.0
        %1679 = vmatpush1.msra.mxu0 0.0
        %1680 = vmatprep.mubr.f32.mxu0 0.0
        %1681 = vmatmul.mubr.f32.gmra.mrb[0].mxu0 %v1614
        %v1682 = vpop.f32.mrb[0].mxu0
        %v1683 = vadd.f32 0.0, %v1682
        %v1684 = vpop.f32.mrb[0].mxu0
        %1685 = vdwg.mxu0
        %v1686 = vadd.f32 %v1445, %v1683
        %1687 = vrot.lane.b32.xlu0 %v1037, 112
        %v1688 = vpop.permute.xlu0 %1687
        %1689 = vrot.lane.b32.xlu0 %v1115, 112
        %v1690 = vpop.permute.xlu0 %1689
        %v1691 = vsel %vm1210, %v1688, 0
        %v1693 = vsel %vm1210, %v1690, 0
        %1695 = vmatprep.subr.mxu0 0.0
        %1696 = vmatpush1.xpose.msra.mxu0 %v1693
        %1697 = vmatprep.subr.mxu0 0.0
        %1698 = vmatpush1.xpose.msra.mxu0 0.0
        %1699 = vmatprep.subr.mxu0 0.0
        %1700 = vmatpush1.xpose.msra.mxu0 0.0
        %1701 = vmatprep.subr.mxu0 0.0
        %1702 = vmatpush1.xpose.msra.mxu0 0.0
        %1703 = vmatprep.subr.mxu0 0.0
        %1704 = vmatpush1.xpose.msra.mxu0 0.0
        %1705 = vmatprep.subr.mxu0 0.0
        %1706 = vmatpush1.xpose.msra.mxu0 0.0
        %1707 = vmatprep.subr.mxu0 0.0
        %1708 = vmatpush1.xpose.msra.mxu0 0.0
        %1709 = vmatprep.subr.mxu0 0.0
        %1710 = vmatpush1.xpose.msra.mxu0 0.0
        %1711 = vmatprep.subr.mxu0 0.0
        %1712 = vmatpush1.xpose.msra.mxu0 0.0
        %1713 = vmatprep.subr.mxu0 0.0
        %1714 = vmatpush1.xpose.msra.mxu0 0.0
        %1715 = vmatprep.subr.mxu0 0.0
        %1716 = vmatpush1.xpose.msra.mxu0 0.0
        %1717 = vmatprep.subr.mxu0 0.0
        %1718 = vmatpush1.xpose.msra.mxu0 0.0
        %1719 = vmatprep.subr.mxu0 0.0
        %1720 = vmatpush1.xpose.msra.mxu0 0.0
        %1721 = vmatprep.subr.mxu0 0.0
        %1722 = vmatpush1.xpose.msra.mxu0 0.0
        %1723 = vmatprep.subr.mxu0 0.0
        %1724 = vmatpush1.xpose.msra.mxu0 0.0
        %1725 = vmatprep.subr.mxu0 0.0
        %1726 = vmatpush1.xpose.msra.mxu0 0.0
        %1727 = vmatprep.subr.mxu0 0.0
        %1728 = vmatpush1.xpose.msra.mxu0 0.0
        %1729 = vmatprep.subr.mxu0 0.0
        %1730 = vmatpush1.xpose.msra.mxu0 0.0
        %1731 = vmatprep.subr.mxu0 0.0
        %1732 = vmatpush1.xpose.msra.mxu0 0.0
        %1733 = vmatprep.subr.mxu0 0.0
        %1734 = vmatpush1.xpose.msra.mxu0 0.0
        %1735 = vmatprep.subr.mxu0 0.0
        %1736 = vmatpush1.xpose.msra.mxu0 0.0
        %1737 = vmatprep.subr.mxu0 0.0
        %1738 = vmatpush1.xpose.msra.mxu0 0.0
        %1739 = vmatprep.subr.mxu0 0.0
        %1740 = vmatpush1.xpose.msra.mxu0 0.0
        %1741 = vmatprep.subr.mxu0 0.0
        %1742 = vmatpush1.xpose.msra.mxu0 0.0
        %1743 = vmatprep.subr.mxu0 0.0
        %1744 = vmatpush1.xpose.msra.mxu0 0.0
        %1745 = vmatprep.subr.mxu0 0.0
        %1746 = vmatpush1.xpose.msra.mxu0 0.0
        %1747 = vmatprep.subr.mxu0 0.0
        %1748 = vmatpush1.xpose.msra.mxu0 0.0
        %1749 = vmatprep.subr.mxu0 0.0
        %1750 = vmatpush1.xpose.msra.mxu0 0.0
        %1751 = vmatprep.subr.mxu0 0.0
        %1752 = vmatpush1.xpose.msra.mxu0 0.0
        %1753 = vmatprep.subr.mxu0 0.0
        %1754 = vmatpush1.xpose.msra.mxu0 0.0
        %1755 = vmatprep.subr.mxu0 0.0
        %1756 = vmatpush1.xpose.msra.mxu0 0.0
        %1757 = vmatprep.subr.mxu0 0.0
        %1758 = vmatpush1.xpose.msra.mxu0 0.0
        %1759 = vmatprep.mubr.f32.mxu0 0.0
        %1760 = vmatmul.mubr.f32.gmra.mrb[0].mxu0 %v1691
        %v1761 = vpop.f32.mrb[0].mxu0
        %v1762 = vadd.f32 %v1208, %v1761
        %v1763 = vpop.f32.mrb[0].mxu0
        %1764 = vdwg.mxu0
        %v1765 = vsel %vm1210, %v1762, -inf
        %1766 = vmax.xlane.f32.xlu0 %v1765
        %v1767 = vpop.xlane.xlu0 %1766
        %v1768 = vsub.f32 %v1762, %v1767
        %v1769 = vmul.f32 %v1768, 1.442695
        %v1770 = vpow.pop %v1769
        %v1771 = vsel %vm1210, %v1770, 0.0
        %1772 = vadd.xlane.f32.xlu0 %v1771
        %v1773 = vpop.xlane.xlu0 %1772
        %v1774 = vrcp.pop %v1773
        %v1775 = vmul.f32 %v1770, %v1774
        %1776 = vrot.lane.b32.xlu0 %v1195, 112
        %v1777 = vpop.permute.xlu0 %1776
        %v1780 = vsel %vm1210, %v1775, 0
        %1782 = vmatprep.subr.mxu0 0.0
        %1783 = vmatpush1.msra.mxu0 %v1777
        %1784 = vmatprep.subr.mxu0 0.0
        %1785 = vmatpush1.msra.mxu0 0.0
        %1786 = vmatprep.subr.mxu0 0.0
        %1787 = vmatpush1.msra.mxu0 0.0
        %1788 = vmatprep.subr.mxu0 0.0
        %1789 = vmatpush1.msra.mxu0 0.0
        %1790 = vmatprep.subr.mxu0 0.0
        %1791 = vmatpush1.msra.mxu0 0.0
        %1792 = vmatprep.subr.mxu0 0.0
        %1793 = vmatpush1.msra.mxu0 0.0
        %1794 = vmatprep.subr.mxu0 0.0
        %1795 = vmatpush1.msra.mxu0 0.0
        %1796 = vmatprep.subr.mxu0 0.0
        %1797 = vmatpush1.msra.mxu0 0.0
        %1798 = vmatprep.subr.mxu0 0.0
        %1799 = vmatpush1.msra.mxu0 0.0
        %1800 = vmatprep.subr.mxu0 0.0
        %1801 = vmatpush1.msra.mxu0 0.0
        %1802 = vmatprep.subr.mxu0 0.0
        %1803 = vmatpush1.msra.mxu0 0.0
        %1804 = vmatprep.subr.mxu0 0.0
        %1805 = vmatpush1.msra.mxu0 0.0
        %1806 = vmatprep.subr.mxu0 0.0
        %1807 = vmatpush1.msra.mxu0 0.0
        %1808 = vmatprep.subr.mxu0 0.0
        %1809 = vmatpush1.msra.mxu0 0.0
        %1810 = vmatprep.subr.mxu0 0.0
        %1811 = vmatpush1.msra.mxu0 0.0
        %1812 = vmatprep.subr.mxu0 0.0
        %1813 = vmatpush1.msra.mxu0 0.0
        %1814 = vmatprep.subr.mxu0 0.0
        %1815 = vmatpush1.msra.mxu0 0.0
        %1816 = vmatprep.subr.mxu0 0.0
        %1817 = vmatpush1.msra.mxu0 0.0
        %1818 = vmatprep.subr.mxu0 0.0
        %1819 = vmatpush1.msra.mxu0 0.0
        %1820 = vmatprep.subr.mxu0 0.0
        %1821 = vmatpush1.msra.mxu0 0.0
        %1822 = vmatprep.subr.mxu0 0.0
        %1823 = vmatpush1.msra.mxu0 0.0
        %1824 = vmatprep.subr.mxu0 0.0
        %1825 = vmatpush1.msra.mxu0 0.0
        %1826 = vmatprep.subr.mxu0 0.0
        %1827 = vmatpush1.msra.mxu0 0.0
        %1828 = vmatprep.subr.mxu0 0.0
        %1829 = vmatpush1.msra.mxu0 0.0
        %1830 = vmatprep.subr.mxu0 0.0
        %1831 = vmatpush1.msra.mxu0 0.0
        %1832 = vmatprep.subr.mxu0 0.0
        %1833 = vmatpush1.msra.mxu0 0.0
        %1834 = vmatprep.subr.mxu0 0.0
        %1835 = vmatpush1.msra.mxu0 0.0
        %1836 = vmatprep.subr.mxu0 0.0
        %1837 = vmatpush1.msra.mxu0 0.0
        %1838 = vmatprep.subr.mxu0 0.0
        %1839 = vmatpush1.msra.mxu0 0.0
        %1840 = vmatprep.subr.mxu0 0.0
        %1841 = vmatpush1.msra.mxu0 0.0
        %1842 = vmatprep.subr.mxu0 0.0
        %1843 = vmatpush1.msra.mxu0 0.0
        %1844 = vmatprep.subr.mxu0 0.0
        %1845 = vmatpush1.msra.mxu0 0.0
        %1846 = vmatprep.mubr.f32.mxu0 0.0
        %1847 = vmatmul.mubr.f32.gmra.mrb[0].mxu0 %v1780
        %v1848 = vpop.f32.mrb[0].mxu0
        %v1849 = vadd.f32 0.0, %v1848
        %v1850 = vpop.f32.mrb[0].mxu0
        %1851 = vdwg.mxu0
        %v1852 = vld [vmem:[%s758 + $0x10] sm:$0xff]
        %v1854 = vsel %vm1210, %v1849, 0
        %1856 = vmatprep.subr.mxu0 0.0
        %1857 = vmatpush1.msra.mxu0 %v1852
        %1858 = vmatprep.subr.mxu0 0.0
        %1859 = vmatpush1.msra.mxu0 0.0
        %1860 = vmatprep.subr.mxu0 0.0
        %1861 = vmatpush1.msra.mxu0 0.0
        %1862 = vmatprep.subr.mxu0 0.0
        %1863 = vmatpush1.msra.mxu0 0.0
        %1864 = vmatprep.subr.mxu0 0.0
        %1865 = vmatpush1.msra.mxu0 0.0
        %1866 = vmatprep.subr.mxu0 0.0
        %1867 = vmatpush1.msra.mxu0 0.0
        %1868 = vmatprep.subr.mxu0 0.0
        %1869 = vmatpush1.msra.mxu0 0.0
        %1870 = vmatprep.subr.mxu0 0.0
        %1871 = vmatpush1.msra.mxu0 0.0
        %1872 = vmatprep.subr.mxu0 0.0
        %1873 = vmatpush1.msra.mxu0 0.0
        %1874 = vmatprep.subr.mxu0 0.0
        %1875 = vmatpush1.msra.mxu0 0.0
        %1876 = vmatprep.subr.mxu0 0.0
        %1877 = vmatpush1.msra.mxu0 0.0
        %1878 = vmatprep.subr.mxu0 0.0
        %1879 = vmatpush1.msra.mxu0 0.0
        %1880 = vmatprep.subr.mxu0 0.0
        %1881 = vmatpush1.msra.mxu0 0.0
        %1882 = vmatprep.subr.mxu0 0.0
        %1883 = vmatpush1.msra.mxu0 0.0
        %1884 = vmatprep.subr.mxu0 0.0
        %1885 = vmatpush1.msra.mxu0 0.0
        %1886 = vmatprep.subr.mxu0 0.0
        %1887 = vmatpush1.msra.mxu0 0.0
        %1888 = vmatprep.subr.mxu0 0.0
        %1889 = vmatpush1.msra.mxu0 0.0
        %1890 = vmatprep.subr.mxu0 0.0
        %1891 = vmatpush1.msra.mxu0 0.0
        %1892 = vmatprep.subr.mxu0 0.0
        %1893 = vmatpush1.msra.mxu0 0.0
        %1894 = vmatprep.subr.mxu0 0.0
        %1895 = vmatpush1.msra.mxu0 0.0
        %1896 = vmatprep.subr.mxu0 0.0
        %1897 = vmatpush1.msra.mxu0 0.0
        %1898 = vmatprep.subr.mxu0 0.0
        %1899 = vmatpush1.msra.mxu0 0.0
        %1900 = vmatprep.subr.mxu0 0.0
        %1901 = vmatpush1.msra.mxu0 0.0
        %1902 = vmatprep.subr.mxu0 0.0
        %1903 = vmatpush1.msra.mxu0 0.0
        %1904 = vmatprep.subr.mxu0 0.0
        %1905 = vmatpush1.msra.mxu0 0.0
        %1906 = vmatprep.subr.mxu0 0.0
        %1907 = vmatpush1.msra.mxu0 0.0
        %1908 = vmatprep.subr.mxu0 0.0
        %1909 = vmatpush1.msra.mxu0 0.0
        %1910 = vmatprep.subr.mxu0 0.0
        %1911 = vmatpush1.msra.mxu0 0.0
        %1912 = vmatprep.subr.mxu0 0.0
        %1913 = vmatpush1.msra.mxu0 0.0
        %1914 = vmatprep.subr.mxu0 0.0
        %1915 = vmatpush1.msra.mxu0 0.0
        %1916 = vmatprep.subr.mxu0 0.0
        %1917 = vmatpush1.msra.mxu0 0.0
        %1918 = vmatprep.subr.mxu0 0.0
        %1919 = vmatpush1.msra.mxu0 0.0
        %1920 = vmatprep.mubr.f32.mxu0 0.0
        %1921 = vmatmul.mubr.f32.gmra.mrb[0].mxu0 %v1854
        %v1922 = vpop.f32.mrb[0].mxu0
        %v1923 = vadd.f32 0.0, %v1922
        %v1924 = vpop.f32.mrb[0].mxu0
        %1925 = vdwg.mxu0
        %v1926 = vadd.f32 %v1686, %v1923
        %1927 = vrot.lane.b32.xlu0 %v1037, 104
        %v1928 = vpop.permute.xlu0 %1927
        %1929 = vrot.lane.b32.xlu0 %v1115, 104
        %v1930 = vpop.permute.xlu0 %1929
        %v1931 = vsel %vm1210, %v1928, 0
        %v1933 = vsel %vm1210, %v1930, 0
        %1935 = vmatprep.subr.mxu0 0.0
        %1936 = vmatpush1.xpose.msra.mxu0 %v1933
        %1937 = vmatprep.subr.mxu0 0.0
        %1938 = vmatpush1.xpose.msra.mxu0 0.0
        %1939 = vmatprep.subr.mxu0 0.0
        %1940 = vmatpush1.xpose.msra.mxu0 0.0
        %1941 = vmatprep.subr.mxu0 0.0
        %1942 = vmatpush1.xpose.msra.mxu0 0.0
        %1943 = vmatprep.subr.mxu0 0.0
        %1944 = vmatpush1.xpose.msra.mxu0 0.0
        %1945 = vmatprep.subr.mxu0 0.0
        %1946 = vmatpush1.xpose.msra.mxu0 0.0
        %1947 = vmatprep.subr.mxu0 0.0
        %1948 = vmatpush1.xpose.msra.mxu0 0.0
        %1949 = vmatprep.subr.mxu0 0.0
        %1950 = vmatpush1.xpose.msra.mxu0 0.0
        %1951 = vmatprep.subr.mxu0 0.0
        %1952 = vmatpush1.xpose.msra.mxu0 0.0
        %1953 = vmatprep.subr.mxu0 0.0
        %1954 = vmatpush1.xpose.msra.mxu0 0.0
        %1955 = vmatprep.subr.mxu0 0.0
        %1956 = vmatpush1.xpose.msra.mxu0 0.0
        %1957 = vmatprep.subr.mxu0 0.0
        %1958 = vmatpush1.xpose.msra.mxu0 0.0
        %1959 = vmatprep.subr.mxu0 0.0
        %1960 = vmatpush1.xpose.msra.mxu0 0.0
        %1961 = vmatprep.subr.mxu0 0.0
        %1962 = vmatpush1.xpose.msra.mxu0 0.0
        %1963 = vmatprep.subr.mxu0 0.0
        %1964 = vmatpush1.xpose.msra.mxu0 0.0
        %1965 = vmatprep.subr.mxu0 0.0
        %1966 = vmatpush1.xpose.msra.mxu0 0.0
        %1967 = vmatprep.subr.mxu0 0.0
        %1968 = vmatpush1.xpose.msra.mxu0 0.0
        %1969 = vmatprep.subr.mxu0 0.0
        %1970 = vmatpush1.xpose.msra.mxu0 0.0
        %1971 = vmatprep.subr.mxu0 0.0
        %1972 = vmatpush1.xpose.msra.mxu0 0.0
        %1973 = vmatprep.subr.mxu0 0.0
        %1974 = vmatpush1.xpose.msra.mxu0 0.0
        %1975 = vmatprep.subr.mxu0 0.0
        %1976 = vmatpush1.xpose.msra.mxu0 0.0
        %1977 = vmatprep.subr.mxu0 0.0
        %1978 = vmatpush1.xpose.msra.mxu0 0.0
        %1979 = vmatprep.subr.mxu0 0.0
        %1980 = vmatpush1.xpose.msra.mxu0 0.0
        %1981 = vmatprep.subr.mxu0 0.0
        %1982 = vmatpush1.xpose.msra.mxu0 0.0
        %1983 = vmatprep.subr.mxu0 0.0
        %1984 = vmatpush1.xpose.msra.mxu0 0.0
        %1985 = vmatprep.subr.mxu0 0.0
        %1986 = vmatpush1.xpose.msra.mxu0 0.0
        %1987 = vmatprep.subr.mxu0 0.0
        %1988 = vmatpush1.xpose.msra.mxu0 0.0
        %1989 = vmatprep.subr.mxu0 0.0
        %1990 = vmatpush1.xpose.msra.mxu0 0.0
        %1991 = vmatprep.subr.mxu0 0.0
        %1992 = vmatpush1.xpose.msra.mxu0 0.0
        %1993 = vmatprep.subr.mxu0 0.0
        %1994 = vmatpush1.xpose.msra.mxu0 0.0
        %1995 = vmatprep.subr.mxu0 0.0
        %1996 = vmatpush1.xpose.msra.mxu0 0.0
        %1997 = vmatprep.subr.mxu0 0.0
        %1998 = vmatpush1.xpose.msra.mxu0 0.0
        %1999 = vmatprep.mubr.f32.mxu0 0.0
        %2000 = vmatmul.mubr.f32.gmra.mrb[0].mxu0 %v1931
        %v2001 = vpop.f32.mrb[0].mxu0
        %v2002 = vadd.f32 %v1208, %v2001
        %v2003 = vpop.f32.mrb[0].mxu0
        %2004 = vdwg.mxu0
        %v2005 = vsel %vm1210, %v2002, -inf
        %2006 = vmax.xlane.f32.xlu0 %v2005
        %v2007 = vpop.xlane.xlu0 %2006
        %v2008 = vsub.f32 %v2002, %v2007
        %v2009 = vmul.f32 %v2008, 1.442695
        %v2010 = vpow.pop %v2009
        %v2011 = vsel %vm1210, %v2010, 0.0
        %2012 = vadd.xlane.f32.xlu0 %v2011
        %v2013 = vpop.xlane.xlu0 %2012
        %v2014 = vrcp.pop %v2013
        %v2015 = vmul.f32 %v2010, %v2014
        %2016 = vrot.lane.b32.xlu0 %v1195, 104
        %v2017 = vpop.permute.xlu0 %2016
        %v2020 = vsel %vm1210, %v2015, 0
        %2022 = vmatprep.subr.mxu0 0.0
        %2023 = vmatpush1.msra.mxu0 %v2017
        %2024 = vmatprep.subr.mxu0 0.0
        %2025 = vmatpush1.msra.mxu0 0.0
        %2026 = vmatprep.subr.mxu0 0.0
        %2027 = vmatpush1.msra.mxu0 0.0
        %2028 = vmatprep.subr.mxu0 0.0
        %2029 = vmatpush1.msra.mxu0 0.0
        %2030 = vmatprep.subr.mxu0 0.0
        %2031 = vmatpush1.msra.mxu0 0.0
        %2032 = vmatprep.subr.mxu0 0.0
        %2033 = vmatpush1.msra.mxu0 0.0
        %2034 = vmatprep.subr.mxu0 0.0
        %2035 = vmatpush1.msra.mxu0 0.0
        %2036 = vmatprep.subr.mxu0 0.0
        %2037 = vmatpush1.msra.mxu0 0.0
        %2038 = vmatprep.subr.mxu0 0.0
        %2039 = vmatpush1.msra.mxu0 0.0
        %2040 = vmatprep.subr.mxu0 0.0
        %2041 = vmatpush1.msra.mxu0 0.0
        %2042 = vmatprep.subr.mxu0 0.0
        %2043 = vmatpush1.msra.mxu0 0.0
        %2044 = vmatprep.subr.mxu0 0.0
        %2045 = vmatpush1.msra.mxu0 0.0
        %2046 = vmatprep.subr.mxu0 0.0
        %2047 = vmatpush1.msra.mxu0 0.0
        %2048 = vmatprep.subr.mxu0 0.0
        %2049 = vmatpush1.msra.mxu0 0.0
        %2050 = vmatprep.subr.mxu0 0.0
        %2051 = vmatpush1.msra.mxu0 0.0
        %2052 = vmatprep.subr.mxu0 0.0
        %2053 = vmatpush1.msra.mxu0 0.0
        %2054 = vmatprep.subr.mxu0 0.0
        %2055 = vmatpush1.msra.mxu0 0.0
        %2056 = vmatprep.subr.mxu0 0.0
        %2057 = vmatpush1.msra.mxu0 0.0
        %2058 = vmatprep.subr.mxu0 0.0
        %2059 = vmatpush1.msra.mxu0 0.0
        %2060 = vmatprep.subr.mxu0 0.0
        %2061 = vmatpush1.msra.mxu0 0.0
        %2062 = vmatprep.subr.mxu0 0.0
        %2063 = vmatpush1.msra.mxu0 0.0
        %2064 = vmatprep.subr.mxu0 0.0
        %2065 = vmatpush1.msra.mxu0 0.0
        %2066 = vmatprep.subr.mxu0 0.0
        %2067 = vmatpush1.msra.mxu0 0.0
        %2068 = vmatprep.subr.mxu0 0.0
        %2069 = vmatpush1.msra.mxu0 0.0
        %2070 = vmatprep.subr.mxu0 0.0
        %2071 = vmatpush1.msra.mxu0 0.0
        %2072 = vmatprep.subr.mxu0 0.0
        %2073 = vmatpush1.msra.mxu0 0.0
        %2074 = vmatprep.subr.mxu0 0.0
        %2075 = vmatpush1.msra.mxu0 0.0
        %2076 = vmatprep.subr.mxu0 0.0
        %2077 = vmatpush1.msra.mxu0 0.0
        %2078 = vmatprep.subr.mxu0 0.0
        %2079 = vmatpush1.msra.mxu0 0.0
        %2080 = vmatprep.subr.mxu0 0.0
        %2081 = vmatpush1.msra.mxu0 0.0
        %2082 = vmatprep.subr.mxu0 0.0
        %2083 = vmatpush1.msra.mxu0 0.0
        %2084 = vmatprep.subr.mxu0 0.0
        %2085 = vmatpush1.msra.mxu0 0.0
        %2086 = vmatprep.mubr.f32.mxu0 0.0
        %2087 = vmatmul.mubr.f32.gmra.mrb[0].mxu0 %v2020
        %v2088 = vpop.f32.mrb[0].mxu0
        %v2089 = vadd.f32 0.0, %v2088
        %v2090 = vpop.f32.mrb[0].mxu0
        %2091 = vdwg.mxu0
        %v2092 = vld [vmem:[%s758 + $0x18] sm:$0xff]
        %v2094 = vsel %vm1210, %v2089, 0
        %2096 = vmatprep.subr.mxu0 0.0
        %2097 = vmatpush1.msra.mxu0 %v2092
        %2098 = vmatprep.subr.mxu0 0.0
        %2099 = vmatpush1.msra.mxu0 0.0
        %2100 = vmatprep.subr.mxu0 0.0
        %2101 = vmatpush1.msra.mxu0 0.0
        %2102 = vmatprep.subr.mxu0 0.0
        %2103 = vmatpush1.msra.mxu0 0.0
        %2104 = vmatprep.subr.mxu0 0.0
        %2105 = vmatpush1.msra.mxu0 0.0
        %2106 = vmatprep.subr.mxu0 0.0
        %2107 = vmatpush1.msra.mxu0 0.0
        %2108 = vmatprep.subr.mxu0 0.0
        %2109 = vmatpush1.msra.mxu0 0.0
        %2110 = vmatprep.subr.mxu0 0.0
        %2111 = vmatpush1.msra.mxu0 0.0
        %2112 = vmatprep.subr.mxu0 0.0
        %2113 = vmatpush1.msra.mxu0 0.0
        %2114 = vmatprep.subr.mxu0 0.0
        %2115 = vmatpush1.msra.mxu0 0.0
        %2116 = vmatprep.subr.mxu0 0.0
        %2117 = vmatpush1.msra.mxu0 0.0
        %2118 = vmatprep.subr.mxu0 0.0
        %2119 = vmatpush1.msra.mxu0 0.0
        %2120 = vmatprep.subr.mxu0 0.0
        %2121 = vmatpush1.msra.mxu0 0.0
        %2122 = vmatprep.subr.mxu0 0.0
        %2123 = vmatpush1.msra.mxu0 0.0
        %2124 = vmatprep.subr.mxu0 0.0
        %2125 = vmatpush1.msra.mxu0 0.0
        %2126 = vmatprep.subr.mxu0 0.0
        %2127 = vmatpush1.msra.mxu0 0.0
        %2128 = vmatprep.subr.mxu0 0.0
        %2129 = vmatpush1.msra.mxu0 0.0
        %2130 = vmatprep.subr.mxu0 0.0
        %2131 = vmatpush1.msra.mxu0 0.0
        %2132 = vmatprep.subr.mxu0 0.0
        %2133 = vmatpush1.msra.mxu0 0.0
        %2134 = vmatprep.subr.mxu0 0.0
        %2135 = vmatpush1.msra.mxu0 0.0
        %2136 = vmatprep.subr.mxu0 0.0
        %2137 = vmatpush1.msra.mxu0 0.0
        %2138 = vmatprep.subr.mxu0 0.0
        %2139 = vmatpush1.msra.mxu0 0.0
        %2140 = vmatprep.subr.mxu0 0.0
        %2141 = vmatpush1.msra.mxu0 0.0
        %2142 = vmatprep.subr.mxu0 0.0
        %2143 = vmatpush1.msra.mxu0 0.0
        %2144 = vmatprep.subr.mxu0 0.0
        %2145 = vmatpush1.msra.mxu0 0.0
        %2146 = vmatprep.subr.mxu0 0.0
        %2147 = vmatpush1.msra.mxu0 0.0
        %2148 = vmatprep.subr.mxu0 0.0
        %2149 = vmatpush1.msra.mxu0 0.0
        %2150 = vmatprep.subr.mxu0 0.0
        %2151 = vmatpush1.msra.mxu0 0.0
        %2152 = vmatprep.subr.mxu0 0.0
        %2153 = vmatpush1.msra.mxu0 0.0
        %2154 = vmatprep.subr.mxu0 0.0
        %2155 = vmatpush1.msra.mxu0 0.0
        %2156 = vmatprep.subr.mxu0 0.0
        %2157 = vmatpush1.msra.mxu0 0.0
        %2158 = vmatprep.subr.mxu0 0.0
        %2159 = vmatpush1.msra.mxu0 0.0
        %2160 = vmatprep.mubr.f32.mxu0 0.0
        %2161 = vmatmul.mubr.f32.gmra.mrb[0].mxu0 %v2094
        %v2162 = vpop.f32.mrb[0].mxu0
        %v2163 = vadd.f32 0.0, %v2162
        %v2164 = vpop.f32.mrb[0].mxu0
        %2165 = vdwg.mxu0
        %v2166 = vadd.f32 %v1926, %v2163
        %v2167 = vadd.f32 %v941, %v2166
        %v2168 = vsel %vm963, %v2167, 0.0
        %2169 = vadd.xlane.f32.xlu0 %v2168
        %v2170 = vpop.xlane.xlu0 %2169
        %v2171 = vrcp.pop 32.0
        %v2172 = vmul.f32 %v2170, %v2171
        %v2173 = vsub.f32 %v2167, %v2172
        %v2174 = vmul.f32 %v2173, %v2173
        %v2175 = vsel %vm963, %v2174, 0.0
        %2176 = vadd.xlane.f32.xlu0 %v2175
        %v2177 = vpop.xlane.xlu0 %2176
        %v2178 = vmul.f32 %v2177, %v2171
        %v2179 = vadd.f32 %v2178, 1e-06
        %v2180 = vrsqrt.pop %v2179
        %v2181 = vmul.f32 %v2173, %v2180
        %v2183 = vlaneseq
        %v2184 = vshrl.u32 %v2183, 7
        %v2185 = vsub.s32 0, %v2184
        %v2186 = vrot.slane %v949, %v2185
        %v2188 = vmul.f32 %v2181, %v2186
        %v2190 = vlaneseq
        %v2191 = vshrl.u32 %v2190, 7
        %v2192 = vsub.s32 0, %v2191
        %v2193 = vrot.slane %v950, %v2192
        %v2195 = vadd.f32 %v2188, %v2193
        %v2196 = vld [vmem:[%s767] sm:$0xff]
        %v2197 = vld [vmem:[%s767 + $0x8] sm:$0xff]
        %v2198 = vld [vmem:[%s767 + $0x10] sm:$0xff]
        %v2199 = vld [vmem:[%s767 + $0x18] sm:$0xff]
        %v2201 = vlaneseq
        %v2202 = vshrl.u32 %v2201, 7
        %v2203 = vsub.s32 0, %v2202
        %v2204 = vrot.slane %v947, %v2203
        %v2207 = vsel %vm963, %v2195, 0
        %2209 = vmatprep.subr.mxu0 0.0
        %2210 = vmatpush1.msra.mxu0 %v2196
        %2211 = vmatprep.subr.mxu0 0.0
        %2212 = vmatpush1.msra.mxu0 %v2197
        %2213 = vmatprep.subr.mxu0 0.0
        %2214 = vmatpush1.msra.mxu0 %v2198
        %2215 = vmatprep.subr.mxu0 0.0
        %2216 = vmatpush1.msra.mxu0 %v2199
        %2217 = vmatprep.subr.mxu0 0.0
        %2218 = vmatpush1.msra.mxu0 0.0
        %2219 = vmatprep.subr.mxu0 0.0
        %2220 = vmatpush1.msra.mxu0 0.0
        %2221 = vmatprep.subr.mxu0 0.0
        %2222 = vmatpush1.msra.mxu0 0.0
        %2223 = vmatprep.subr.mxu0 0.0
        %2224 = vmatpush1.msra.mxu0 0.0
        %2225 = vmatprep.subr.mxu0 0.0
        %2226 = vmatpush1.msra.mxu0 0.0
        %2227 = vmatprep.subr.mxu0 0.0
        %2228 = vmatpush1.msra.mxu0 0.0
        %2229 = vmatprep.subr.mxu0 0.0
        %2230 = vmatpush1.msra.mxu0 0.0
        %2231 = vmatprep.subr.mxu0 0.0
        %2232 = vmatpush1.msra.mxu0 0.0
        %2233 = vmatprep.subr.mxu0 0.0
        %2234 = vmatpush1.msra.mxu0 0.0
        %2235 = vmatprep.subr.mxu0 0.0
        %2236 = vmatpush1.msra.mxu0 0.0
        %2237 = vmatprep.subr.mxu0 0.0
        %2238 = vmatpush1.msra.mxu0 0.0
        %2239 = vmatprep.subr.mxu0 0.0
        %2240 = vmatpush1.msra.mxu0 0.0
        %2241 = vmatprep.subr.mxu0 0.0
        %2242 = vmatpush1.msra.mxu0 0.0
        %2243 = vmatprep.subr.mxu0 0.0
        %2244 = vmatpush1.msra.mxu0 0.0
        %2245 = vmatprep.subr.mxu0 0.0
        %2246 = vmatpush1.msra.mxu0 0.0
        %2247 = vmatprep.subr.mxu0 0.0
        %2248 = vmatpush1.msra.mxu0 0.0
        %2249 = vmatprep.subr.mxu0 0.0
        %2250 = vmatpush1.msra.mxu0 0.0
        %2251 = vmatprep.subr.mxu0 0.0
        %2252 = vmatpush1.msra.mxu0 0.0
        %2253 = vmatprep.subr.mxu0 0.0
        %2254 = vmatpush1.msra.mxu0 0.0
        %2255 = vmatprep.subr.mxu0 0.0
        %2256 = vmatpush1.msra.mxu0 0.0
        %2257 = vmatprep.subr.mxu0 0.0
        %2258 = vmatpush1.msra.mxu0 0.0
        %2259 = vmatprep.subr.mxu0 0.0
        %2260 = vmatpush1.msra.mxu0 0.0
        %2261 = vmatprep.subr.mxu0 0.0
        %2262 = vmatpush1.msra.mxu0 0.0
        %2263 = vmatprep.subr.mxu0 0.0
        %2264 = vmatpush1.msra.mxu0 0.0
        %2265 = vmatprep.subr.mxu0 0.0
        %2266 = vmatpush1.msra.mxu0 0.0
        %2267 = vmatprep.subr.mxu0 0.0
        %2268 = vmatpush1.msra.mxu0 0.0
        %2269 = vmatprep.subr.mxu0 0.0
        %2270 = vmatpush1.msra.mxu0 0.0
        %2271 = vmatprep.subr.mxu0 0.0
        %2272 = vmatpush1.msra.mxu0 0.0
        %2273 = vmatprep.mubr.f32.mxu0 0.0
        %2274 = vmatmul.mubr.f32.gmra.mrb[0].mxu0 %v2207
        %v2275 = vpop.f32.mrb[0].mxu0
        %v2276 = vadd.f32 %v2204, %v2275
        %v2277 = vpop.f32.mrb[0].mxu0
        %2278 = vdwg.mxu0
        %v2279 = vmul.f32 %v2276, 0.5
        %v2280 = vrcp.pop 1.41421
        %v2281 = vmul.f32 %v2276, %v2280
        %v2282 = verf.f32.pop %v2281
        %v2283 = vadd.f32 %v2282, 1.0
        %v2284 = vmul.f32 %v2279, %v2283
        %v2285 = vld [vmem:[%s918] sm:$0xff]
        %v2286 = vld [vmem:[%s918 + $0x8] sm:$0xff]
        %v2287 = vld [vmem:[%s918 + $0x10] sm:$0xff]
        %v2288 = vld [vmem:[%s918 + $0x18] sm:$0xff]
        %v2289 = vld [vmem:[%s918 + $0x20] sm:$0xff]
        %v2290 = vld [vmem:[%s918 + $0x28] sm:$0xff]
        %v2291 = vld [vmem:[%s918 + $0x30] sm:$0xff]
        %v2292 = vld [vmem:[%s918 + $0x38] sm:$0xff]
        %vm2293 = vcmask 523264
        %v2295 = vsel %vm2293, %v2284, 0
        %2297 = vmatprep.subr.mxu0 0.0
        %2298 = vmatpush1.msra.mxu0 %v2285
        %2299 = vmatprep.subr.mxu0 0.0
        %2300 = vmatpush1.msra.mxu0 %v2286
        %2301 = vmatprep.subr.mxu0 0.0
        %2302 = vmatpush1.msra.mxu0 %v2287
        %2303 = vmatprep.subr.mxu0 0.0
        %2304 = vmatpush1.msra.mxu0 %v2288
        %2305 = vmatprep.subr.mxu0 0.0
        %2306 = vmatpush1.msra.mxu0 %v2289
        %2307 = vmatprep.subr.mxu0 0.0
        %2308 = vmatpush1.msra.mxu0 %v2290
        %2309 = vmatprep.subr.mxu0 0.0
        %2310 = vmatpush1.msra.mxu0 %v2291
        %2311 = vmatprep.subr.mxu0 0.0
        %2312 = vmatpush1.msra.mxu0 %v2292
        %2313 = vmatprep.subr.mxu0 0.0
        %2314 = vmatpush1.msra.mxu0 0.0
        %2315 = vmatprep.subr.mxu0 0.0
        %2316 = vmatpush1.msra.mxu0 0.0
        %2317 = vmatprep.subr.mxu0 0.0
        %2318 = vmatpush1.msra.mxu0 0.0
        %2319 = vmatprep.subr.mxu0 0.0
        %2320 = vmatpush1.msra.mxu0 0.0
        %2321 = vmatprep.subr.mxu0 0.0
        %2322 = vmatpush1.msra.mxu0 0.0
        %2323 = vmatprep.subr.mxu0 0.0
        %2324 = vmatpush1.msra.mxu0 0.0
        %2325 = vmatprep.subr.mxu0 0.0
        %2326 = vmatpush1.msra.mxu0 0.0
        %2327 = vmatprep.subr.mxu0 0.0
        %2328 = vmatpush1.msra.mxu0 0.0
        %2329 = vmatprep.subr.mxu0 0.0
        %2330 = vmatpush1.msra.mxu0 0.0
        %2331 = vmatprep.subr.mxu0 0.0
        %2332 = vmatpush1.msra.mxu0 0.0
        %2333 = vmatprep.subr.mxu0 0.0
        %2334 = vmatpush1.msra.mxu0 0.0
        %2335 = vmatprep.subr.mxu0 0.0
        %2336 = vmatpush1.msra.mxu0 0.0
        %2337 = vmatprep.subr.mxu0 0.0
        %2338 = vmatpush1.msra.mxu0 0.0
        %2339 = vmatprep.subr.mxu0 0.0
        %2340 = vmatpush1.msra.mxu0 0.0
        %2341 = vmatprep.subr.mxu0 0.0
        %2342 = vmatpush1.msra.mxu0 0.0
        %2343 = vmatprep.subr.mxu0 0.0
        %2344 = vmatpush1.msra.mxu0 0.0
        %2345 = vmatprep.subr.mxu0 0.0
        %2346 = vmatpush1.msra.mxu0 0.0
        %2347 = vmatprep.subr.mxu0 0.0
        %2348 = vmatpush1.msra.mxu0 0.0
        %2349 = vmatprep.subr.mxu0 0.0
        %2350 = vmatpush1.msra.mxu0 0.0
        %2351 = vmatprep.subr.mxu0 0.0
        %2352 = vmatpush1.msra.mxu0 0.0
        %2353 = vmatprep.subr.mxu0 0.0
        %2354 = vmatpush1.msra.mxu0 0.0
        %2355 = vmatprep.subr.mxu0 0.0
        %2356 = vmatpush1.msra.mxu0 0.0
        %2357 = vmatprep.subr.mxu0 0.0
        %2358 = vmatpush1.msra.mxu0 0.0
        %2359 = vmatprep.subr.mxu0 0.0
        %2360 = vmatpush1.msra.mxu0 0.0
        %2361 = vmatprep.mubr.f32.mxu0 0.0
        %2362 = vmatmul.mubr.f32.gmra.mrb[0].mxu0 %v2295
        %v2363 = vpop.f32.mrb[0].mxu0
        %v2364 = vadd.f32 0.0, %v2363
        %v2365 = vpop.f32.mrb[0].mxu0
        %2366 = vdwg.mxu0
        %v2367 = vadd.f32 %v2195, %v2364
        %v2369 = vlaneseq
        %v2370 = vshrl.u32 %v2369, 7
        %v2371 = vsub.s32 0, %v2370
        %v2372 = vrot.slane %v948, %v2371
        %v2374 = vadd.f32 %v2367, %v2372
        %v2375 = vsel %vm963, %v2374, 0.0
        %2376 = vadd.xlane.f32.xlu0 %v2375
        %v2377 = vpop.xlane.xlu0 %2376
        %v2378 = vmul.f32 %v2377, %v2171
        %v2379 = vsub.f32 %v2374, %v2378
        %v2380 = vmul.f32 %v2379, %v2379
        %v2381 = vsel %vm963, %v2380, 0.0
        %2382 = vadd.xlane.f32.xlu0 %v2381
        %v2383 = vpop.xlane.xlu0 %2382
        %v2384 = vmul.f32 %v2383, %v2171
        %v2385 = vadd.f32 %v2384, 1e-06
        %v2386 = vrsqrt.pop %v2385
        %v2387 = vmul.f32 %v2379, %v2386
        %v2389 = vlaneseq
        %v2390 = vshrl.u32 %v2389, 7
        %v2391 = vsub.s32 0, %v2390
        %v2392 = vrot.slane %v951, %v2391
        %v2394 = vmul.f32 %v2387, %v2392
        %v2396 = vlaneseq
        %v2397 = vshrl.u32 %v2396, 7
        %v2398 = vsub.s32 0, %v2397
        %v2399 = vrot.slane %v952, %v2398
        %v2401 = vadd.f32 %v2394, %v2399
        %2402 = vst.msk [vmem:[#allocation2] sm:$0xff] %vm963, %v2401
        %p2403 = scmp.eq.s32.totalorder %s46, 1
        // Predicated region
        $region113: #{tpu_custom_call.1} parent=91 // pred_check
          %p2404 = pneg %p2403
        $region114: #{tpu_custom_call.1} parent=91 // pred_check_branch
          %2406 = sbr.rel (%p2404) target = $region116
        $region115: #{tpu_custom_call.1} parent=91 // pred_region
          %v2407 = vld [vmem:[#allocation2] sm:$0xff]
          %2408 = vst.msk [vmem:[%s883] sm:$0xff] %vm963, %v2407
        $region116: #{tpu_custom_call.1} parent=91 // pred_fallthru
          _
        %s2409 = sand.u32 %s529, 1
        %s2410 = scalar_lea.sflag [#allocation5], %s2409
        %s2411 = sand.u32 %s529, 1
        %s2412 = smul.addr %s2411, 8
        %s2413 = scalar_lea.vmem [#allocation11], %s2412
        // Predicated region
        $region117: #{tpu_custom_call.1} parent=91 // pred_check
          %p2414 = pneg %p539
        $region118: #{tpu_custom_call.1} parent=91 // pred_check_branch
          %2416 = sbr.rel (%p2414) target = $region120
        $region119: #{tpu_custom_call.1} parent=91 // pred_region
          %s2418 = ssub.s32 128, 128
          %2419 = vsyncadd %s2410, %s2418
          %s2420 = smul.addr %s45, 128
          %s2421 = scalar_lea.hbm %s18, %s2420
          %s2423 = sshll.u32 %s2413, 4
          %s2424 = int_to_ptr.vmem [resolvable:$true] %s2423
          %2426 = dma.vmem_to_hbm [thread:$0]  %s2424, 128, %s2421, %s2410
        $region120: #{tpu_custom_call.1} parent=91 // pred_fallthru
          _
      $region92: #{tpu_custom_call.1} parent=5 // pred_fallthru
        _
      %p2427 = scmp.le.s32.totalorder 2, %s36
      // Predicated region
      $region121: #{tpu_custom_call.1} parent=5 // pred_check
        %p2428 = pneg %p2427
      $region122: #{tpu_custom_call.1} parent=5 // pred_check_branch
        %2430 = sbr.rel (%p2428) target = $region124
      $region123: #{tpu_custom_call.1} parent=5 // pred_region
        %s2431 = ssub.s32 %s36, 2
        // Predicated region
        $region125: #{tpu_custom_call.1} parent=123 // pred_check
          %p2432 = pneg %p545
        $region126: #{tpu_custom_call.1} parent=123 // pred_check_branch
          %2434 = sbr.rel (%p2432) target = $region128
        $region127: #{tpu_custom_call.1} parent=123 // pred_region
          %s2435 = sand.u32 %s530, 1
          %s2436 = scalar_lea.sflag [#allocation5], %s2435
          %s2437 = sand.u32 %s530, 1
          %s2438 = smul.addr %s2437, 8
          %s2439 = scalar_lea.vmem [#allocation11], %s2438
          %2440 = dma.done %s2436, 128
        $region128: #{tpu_custom_call.1} parent=123 // pred_fallthru
          _
      $region124: #{tpu_custom_call.1} parent=5 // pred_fallthru
        _
    $region6: #{tpu_custom_call.1} parent=1 // loop_footer
      %s40 = sadd.s32 1, %s36
    $region7: #{tpu_custom_call.1} parent=1 // loop_footer_branch
      %35 = sbr.rel target = $region3
    $region8: #{tpu_custom_call.1} parent=1 // loop_exit
      _
    %2441 = vsyncpa [#allocation4], 1
    %s2442 = scalar_lea.sflag [#allocation4], 1
    %2443 = vsyncpa %s2442, 1
    %2444 = vsyncpa [#allocation7], 1
    %s2445 = scalar_lea.sflag [#allocation7], 1
    %2446 = vsyncpa %s2445, 1
    %2447 = vsyncpa [#allocation10], 1
    %s2448 = scalar_lea.sflag [#allocation10], 1
    %2449 = vsyncpa %s2448, 1
    %2450 = vsyncpa [#allocation5], 1
    %s2451 = scalar_lea.sflag [#allocation5], 1
    %2452 = vsyncpa %s2451, 1

</llo_original>
